<compile_context>
chip_gen: v7x
topology: tpu7x:2x2x1
jax: 0.10.0
libtpu: 0.0.40
codegen_flags: <defaults>
</compile_context>

<pallas_src>
import jax
import jax.numpy as jnp
from jax.experimental import pallas as pl
from jax.experimental.pallas import tpu as pltpu

BN_EPS = 1e-5
_MiB = 1024 * 1024


# ----------------------------------------------------------------------------- helpers
def _rup(x, m):
    """Round x up to a multiple of m."""
    return -(-x // m) * m


def _vmem_config():
    """Generation-aware (scoped VMEM limit, double-buffered working-set budget)."""
    try:
        cap = int(pltpu.get_tpu_info().vmem_capacity_bytes)
    except Exception:
        cap = 64 * _MiB                                   # conservative v7x-sized fallback
    limit = int(min(cap * 3 // 4, 96 * _MiB))             # v5e/v6e: 96 MiB, v7x: 48 MiB
    budget = int(min(cap * 11 // 20, 56 * _MiB))          # v5e/v6e: 56 MiB, v7x: ~35 MiB
    return limit, budget


def _pick_channel_tile(B, C, H, W, x_itemsize, budget):
    """Largest channel tile TC (divisor of C, multiple of 8, or C itself) whose
    double-buffered per-step working set fits `budget`, preferring >= 4 (then >= 2)
    total grid steps so parallel grids never collapse to a single step per core."""
    hw_pad = _rup(H * W, 128)
    side_pad = _rup(H, 128) + _rup(W, 128)
    per_c = 2 * (2 * hw_pad * x_itemsize                  # x block + out block (double-buffered)
                 + side_pad * 4)                          # pooled / h / w blocks (f32)
    cands = sorted({d for d in range(8, C + 1, 8) if C % d == 0} | {C})
    fits = [c for c in cands if c * per_c <= budget]
    if not fits:
        return cands[0]
    for min_steps in (4, 2, 1):
        ok = [c for c in fits if B * (C // c) >= min_steps]
        if ok:
            return max(ok)
    return max(fits)


def _pool_expand_matrices(H, W):
    """Constant matrices for the flattened-spatial layout (k = i*W + j):
       A_h (H*W, H): column i averages row i over W          (pooled_h = x_flat @ A_h)
       A_w (H*W, W): column j averages column j over H       (pooled_w = x_flat @ A_w)
       E_h (H, H*W): row i is 1 on all k with k // W == i    (broadcast h over W)
       E_w (W, H*W): row j is 1 on all k with k %  W == j    (broadcast w over H)"""
    k = jnp.arange(H * W, dtype=jnp.int32)
    row = k // W
    col = k % W
    ih = jnp.arange(H, dtype=jnp.int32)
    iw = jnp.arange(W, dtype=jnp.int32)
    a_h = (row[:, None] == ih[None, :]).astype(jnp.float32) / float(W)   # (HW, H)
    a_w = (col[:, None] == iw[None, :]).astype(jnp.float32) / float(H)   # (HW, W)
    e_h = (ih[:, None] == row[None, :]).astype(jnp.float32)              # (H, HW)
    e_w = (iw[:, None] == col[None, :]).astype(jnp.float32)              # (W, HW)
    return a_h, a_w, e_h, e_w


# ----------------------------------------------------------------------------- kernels
def _pool_kernel(x_ref, ah_ref, aw_ref, ph_ref, pw_ref):
    """Both coordinate average pools for one (1, TC, H*W) block, as MXU matmuls
    against the constant averaging matrices (full lane density, MXU is otherwise idle)."""
    x = x_ref[0].astype(jnp.float32)                                       # (TC, H*W)
    ph_ref[0] = jnp.dot(x, ah_ref[...], preferred_element_type=jnp.float32)  # (TC, H)
    pw_ref[0] = jnp.dot(x, aw_ref[...], preferred_element_type=jnp.float32)  # (TC, W)


def _tiny_k_matmul(w_mat, a):
    """(C, Cr) @ (Cr, S) with tiny K = Cr: Cr VPU broadcast multiply-adds instead of an
    MXU matmul whose push/drain latency would dominate at K ~ 4."""
    out = w_mat[:, 0:1] * a[0:1, :]
    for r in range(1, a.shape[0]):
        out = out + w_mat[:, r:r + 1] * a[r:r + 1, :]
    return out


def _stats_kernel(ph_ref, pw_ref, w1_ref, gamma_ref, beta_ref, wh_ref, ww_ref,
                  h_out_ref, w_out_ref):
    """conv1 + BatchNorm (training-mode batch stats over both branches jointly) + ReLU +
    conv_h / conv_w on the tiny pooled maps.

    ph: (B,C,H)  pw: (B,C,W)  w1: (Cr,C)  gamma/beta: (Cr,1)  wh/ww: (C,Cr)
    h_out: (B,C,H)  w_out: (B,C,W)   (all f32)
    """
    B = ph_ref.shape[0]
    H = ph_ref.shape[2]
    W = pw_ref.shape[2]
    w1 = w1_ref[...]

    # conv1 (1x1, C -> Cr).  Applying it to each pooled branch separately is identical to
    # applying it to torch.cat([...], dim=2) in the reference.
    yh = [jnp.dot(w1, ph_ref[b], preferred_element_type=jnp.float32) for b in range(B)]  # (Cr,H)
    yw = [jnp.dot(w1, pw_ref[b], preferred_element_type=jnp.float32) for b in range(B)]  # (Cr,W)

    # BatchNorm2d training-mode batch statistics over the concatenated (H + W) map and the
    # whole batch, per channel Cr (biased variance, eps = 1e-5).
    n = float(B * (H + W))
    mean = sum([jnp.sum(y, axis=1, keepdims=True) for y in yh + yw]) / n            # (Cr,1)
    var = sum([jnp.sum((y - mean) ** 2, axis=1, keepdims=True) for y in yh + yw]) / n
    scale = gamma_ref[...] * jax.lax.rsqrt(var + BN_EPS)                             # (Cr,1)
    shift = beta_ref[...] - mean * scale                                             # (Cr,1)

    wh = wh_ref[...]
    ww = ww_ref[...]
    for b in range(B):
        ah = jnp.maximum(yh[b] * scale + shift, 0.0)        # BN + ReLU, (Cr, H)
        aw = jnp.maximum(yw[b] * scale + shift, 0.0)        # (Cr, W)
        h_out_ref[b] = _tiny_k_matmul(wh, ah)               # conv_h: (C, H)
        w_out_ref[b] = _tiny_k_matmul(ww, aw)               # conv_w: (C, W)


def _gate_kernel(x_ref, h_ref, w_ref, eh_ref, ew_ref, o_ref):
    """out = x * sigmoid(h ⊕ w) for one (1, TC, H*W) block in packed spatial layout.

    The two constant 0/1 expansion matmuls place h (broadcast over W) and w (broadcast
    over H) directly on the dense H*W lane axis, so the sigmoid and multiply use full
    128-lane vregs instead of W/128-utilized ones."""
    logit = (jnp.dot(h_ref[0], eh_ref[...], preferred_element_type=jnp.float32)
             + jnp.dot(w_ref[0], ew_ref[...], preferred_element_type=jnp.float32))  # (TC, H*W)
    attn = jax.nn.sigmoid(logit)
    o_ref[0] = (x_ref[0].astype(jnp.float32) * attn).astype(o_ref.dtype)


# ----------------------------------------------------------------------------- wrapper
def prepare_params(w1, gamma, beta, wh, ww):
    """One-time parameter preparation (hoisted out of the forward path)."""
    cr = w1.shape[0]
    return (jnp.asarray(w1, jnp.float32),
            jnp.asarray(gamma, jnp.float32).reshape(cr, 1),
            jnp.asarray(beta, jnp.float32).reshape(cr, 1),
            jnp.asarray(wh, jnp.float32),
            jnp.asarray(ww, jnp.float32))


@jax.jit
def coord_attention(x, w1, gamma2, beta2, wh, ww):
    """CoordAttention forward.  x: (B, C, H, W) in PyTorch NCHW layout, any float dtype.
    (The reference's torch.cat along dim=2 requires H == W; this implementation computes
    the same thing and also generalizes to H != W.)"""
    B, C, H, W = x.shape
    HW = H * W
    x_flat = x.reshape(B, C, HW)                 # free HBM metadata reshape (row-major NCHW)

    vmem_limit, vmem_budget = _vmem_config()
    a_h, a_w, e_h, e_w = _pool_expand_matrices(H, W)
    # Constant-matrix VMEM footprint (counted double-buffered) comes off the tile budget.
    const_bytes = 2 * 4 * (_rup(HW, 8) * (_rup(H, 128) + _rup(W, 128))      # A_h, A_w
                           + (_rup(H, 8) + _rup(W, 8)) * _rup(HW, 128))     # E_h, E_w
    tc = _pick_channel_tile(B, C, H, W, x.dtype.itemsize,
                            max(vmem_budget - const_bytes, 2 * _MiB))
    grid = (B, C // tc)
    gridded_params = pltpu.CompilerParams(
        dimension_semantics=("parallel", "parallel"),
        vmem_limit_bytes=vmem_limit)

    # ---- stage 1: both coordinate average pools (reads x once; tiled, pipelined) --------
    pooled_h, pooled_w = pl.pallas_call(
        _pool_kernel,
        grid=grid,
        in_specs=[pl.BlockSpec((1, tc, HW), lambda b, c: (b, c, 0)),
                  pl.BlockSpec((HW, H), lambda b, c: (0, 0)),
                  pl.BlockSpec((HW, W), lambda b, c: (0, 0))],
        out_specs=(pl.BlockSpec((1, tc, H), lambda b, c: (b, c, 0)),
                   pl.BlockSpec((1, tc, W), lambda b, c: (b, c, 0))),
        out_shape=(jax.ShapeDtypeStruct((B, C, H), jnp.float32),
                   jax.ShapeDtypeStruct((B, C, W), jnp.float32)),
        compiler_params=gridded_params,
    )(x_flat, a_h, a_w)

    # ---- stage 2: conv1 + BN (batch stats) + ReLU + conv_h/conv_w (tiny, VMEM-resident) --
    # TODO(synk): grid this stage over B (with sum/sumsq accumulation scratch) for very
    # large B*C*(H+W); the whole-array VMEM form is only appropriate for moderate shapes.
    vmem = pl.BlockSpec(memory_space=pltpu.MemorySpace.VMEM)
    h_out, w_out = pl.pallas_call(
        _stats_kernel,
        in_specs=[vmem] * 7,
        out_specs=(vmem, vmem),
        out_shape=(jax.ShapeDtypeStruct((B, C, H), jnp.float32),
                   jax.ShapeDtypeStruct((B, C, W), jnp.float32)),
        compiler_params=pltpu.CompilerParams(vmem_limit_bytes=vmem_limit),
    )(pooled_h, pooled_w, w1, gamma2, beta2, wh, ww)

    # ---- stage 3: elementwise gate in packed layout, tiled, double-buffered, megacore ----
    out_flat = pl.pallas_call(
        _gate_kernel,
        grid=grid,
        in_specs=[pl.BlockSpec((1, tc, HW), lambda b, c: (b, c, 0)),
                  pl.BlockSpec((1, tc, H), lambda b, c: (b, c, 0)),
                  pl.BlockSpec((1, tc, W), lambda b, c: (b, c, 0)),
                  pl.BlockSpec((H, HW), lambda b, c: (0, 0)),
                  pl.BlockSpec((W, HW), lambda b, c: (0, 0))],
        out_specs=pl.BlockSpec((1, tc, HW), lambda b, c: (b, c, 0)),
        out_shape=jax.ShapeDtypeStruct((B, C, HW), x.dtype),
        compiler_params=gridded_params,
    )(x_flat, h_out, w_out, e_h, e_w)
    return out_flat.reshape(B, C, H, W)


# ----------------------------------------------------------------------------- main
def _reference(x, w1, gamma, beta, wh, ww):
    """Pure-jnp reference of the same forward semantics (training-mode BN)."""
    H = x.shape[2]
    xf = x.astype(jnp.float32)
    ph = jnp.mean(xf, axis=3)                                   # (B, C, H)
    pw = jnp.mean(xf, axis=2)                                   # (B, C, W)
    yh = jnp.einsum("rc,bch->brh", w1, ph)
    yw = jnp.einsum("rc,bcw->brw", w1, pw)
    ycat = jnp.concatenate([yh, yw], axis=2)                    # (B, Cr, H+W)
    mean = jnp.mean(ycat, axis=(0, 2), keepdims=True)
    var = jnp.mean((ycat - mean) ** 2, axis=(0, 2), keepdims=True)
    ycat = jax.nn.relu((ycat - mean) / jnp.sqrt(var + BN_EPS) * gamma[None, :, None]
                       + beta[None, :, None])
    yh, yw = ycat[:, :, :H], ycat[:, :, H:]
    ho = jnp.einsum("cr,brh->bch", wh, yh)
    wo = jnp.einsum("cr,brw->bcw", ww, yw)
    return (xf * jax.nn.sigmoid(ho[:, :, :, None] + wo[:, :, None, :])).astype(x.dtype)


if __name__ == "__main__":
    key = jax.random.PRNGKey(0)
    B, C, H, W = 2, 64, 16, 16
    reduction = 16
    Cr = C // reduction

    k = jax.random.split(key, 4)
    x = jax.random.normal(k[0], (B, C, H, W), dtype=jnp.float32)

    # Parameter shapes follow the PyTorch __init__ (1x1 convs, bias=False; BN affine defaults).
    w1 = jax.random.normal(k[1], (Cr, C), dtype=jnp.float32) / jnp.sqrt(float(C))
    wh = jax.random.normal(k[2], (C, Cr), dtype=jnp.float32) / jnp.sqrt(float(Cr))
    ww = jax.random.normal(k[3], (C, Cr), dtype=jnp.float32) / jnp.sqrt(float(Cr))
    gamma = jnp.ones((Cr,), dtype=jnp.float32)
    beta = jnp.zeros((Cr,), dtype=jnp.float32)

    params = prepare_params(w1, gamma, beta, wh, ww)
    out = jax.block_until_ready(coord_attention(x, *params))

    assert out.shape == (B, C, H, W) and out.dtype == x.dtype
    ref = _reference(x, w1, gamma, beta, wh, ww)
    assert jnp.allclose(out, ref, atol=1e-4, rtol=1e-4), "kernel mismatch vs jnp reference"
    print("KERNEL_OK")
</pallas_src>

<mosaic_0001>
module attributes {stable_mosaic.version = 11 : i64} {
  func.func @_stats_kernel(%arg0: memref<2x64x16xf32, #tpu.memory_space<vmem>>, %arg1: memref<2x64x16xf32, #tpu.memory_space<vmem>>, %arg2: memref<4x64xf32, #tpu.memory_space<vmem>>, %arg3: memref<4x1xf32, #tpu.memory_space<vmem>>, %arg4: memref<4x1xf32, #tpu.memory_space<vmem>>, %arg5: memref<64x4xf32, #tpu.memory_space<vmem>>, %arg6: memref<64x4xf32, #tpu.memory_space<vmem>>, %arg7: memref<2x64x16xf32, #tpu.memory_space<vmem>>, %arg8: memref<2x64x16xf32, #tpu.memory_space<vmem>>) attributes {dimension_semantics = [], scalar_prefetch = 0 : i64, scratch_operands = 0 : i64, tpu.core_type = #tpu.core_type<tc>} {
    %c0 = arith.constant 0 : index
    %c0_0 = arith.constant 0 : index
    %0 = vector.load %arg2[%c0, %c0_0] : memref<4x64xf32, #tpu.memory_space<vmem>>, vector<4x64xf32>
    %c0_1 = arith.constant 0 : index
    %c0_2 = arith.constant 0 : index
    %c0_3 = arith.constant 0 : index
    %1 = vector.load %arg0[%c0_1, %c0_2, %c0_3] : memref<2x64x16xf32, #tpu.memory_space<vmem>>, vector<1x64x16xf32>
    %2 = vector.shape_cast %1 : vector<1x64x16xf32> to vector<64x16xf32>
    %cst = arith.constant dense<0.000000e+00> : vector<4x16xf32>
    %3 = tpu.matmul %0, %2, %cst {dimension_numbers = #tpu.dot_dimension_numbers<[1], [0], [0], [1], [0, 0, 1, 1], [], []>} : vector<4x64xf32>, vector<64x16xf32>, vector<4x16xf32> -> vector<4x16xf32>
    %c1 = arith.constant 1 : index
    %c0_4 = arith.constant 0 : index
    %c0_5 = arith.constant 0 : index
    %4 = vector.load %arg0[%c1, %c0_4, %c0_5] : memref<2x64x16xf32, #tpu.memory_space<vmem>>, vector<1x64x16xf32>
    %5 = vector.shape_cast %4 : vector<1x64x16xf32> to vector<64x16xf32>
    %cst_6 = arith.constant dense<0.000000e+00> : vector<4x16xf32>
    %6 = tpu.matmul %0, %5, %cst_6 {dimension_numbers = #tpu.dot_dimension_numbers<[1], [0], [0], [1], [0, 0, 1, 1], [], []>} : vector<4x64xf32>, vector<64x16xf32>, vector<4x16xf32> -> vector<4x16xf32>
    %c0_7 = arith.constant 0 : index
    %c0_8 = arith.constant 0 : index
    %c0_9 = arith.constant 0 : index
    %7 = vector.load %arg1[%c0_7, %c0_8, %c0_9] : memref<2x64x16xf32, #tpu.memory_space<vmem>>, vector<1x64x16xf32>
    %8 = vector.shape_cast %7 : vector<1x64x16xf32> to vector<64x16xf32>
    %cst_10 = arith.constant dense<0.000000e+00> : vector<4x16xf32>
    %9 = tpu.matmul %0, %8, %cst_10 {dimension_numbers = #tpu.dot_dimension_numbers<[1], [0], [0], [1], [0, 0, 1, 1], [], []>} : vector<4x64xf32>, vector<64x16xf32>, vector<4x16xf32> -> vector<4x16xf32>
    %c1_11 = arith.constant 1 : index
    %c0_12 = arith.constant 0 : index
    %c0_13 = arith.constant 0 : index
    %10 = vector.load %arg1[%c1_11, %c0_12, %c0_13] : memref<2x64x16xf32, #tpu.memory_space<vmem>>, vector<1x64x16xf32>
    %11 = vector.shape_cast %10 : vector<1x64x16xf32> to vector<64x16xf32>
    %cst_14 = arith.constant dense<0.000000e+00> : vector<4x16xf32>
    %12 = tpu.matmul %0, %11, %cst_14 {dimension_numbers = #tpu.dot_dimension_numbers<[1], [0], [0], [1], [0, 0, 1, 1], [], []>} : vector<4x64xf32>, vector<64x16xf32>, vector<4x16xf32> -> vector<4x16xf32>
    %cst_15 = arith.constant dense<0.000000e+00> : vector<4xf32>
    %13 = vector.multi_reduction <add>, %3, %cst_15 [1] : vector<4x16xf32> to vector<4xf32>
    %14 = vector.shape_cast %13 : vector<4xf32> to vector<4x1xf32>
    %cst_16 = arith.constant dense<0.000000e+00> : vector<4xf32>
    %15 = vector.multi_reduction <add>, %6, %cst_16 [1] : vector<4x16xf32> to vector<4xf32>
    %16 = vector.shape_cast %15 : vector<4xf32> to vector<4x1xf32>
    %cst_17 = arith.constant dense<0.000000e+00> : vector<4xf32>
    %17 = vector.multi_reduction <add>, %9, %cst_17 [1] : vector<4x16xf32> to vector<4xf32>
    %18 = vector.shape_cast %17 : vector<4xf32> to vector<4x1xf32>
    %cst_18 = arith.constant dense<0.000000e+00> : vector<4xf32>
    %19 = vector.multi_reduction <add>, %12, %cst_18 [1] : vector<4x16xf32> to vector<4xf32>
    %20 = vector.shape_cast %19 : vector<4xf32> to vector<4x1xf32>
    %cst_19 = arith.constant 0.000000e+00 : f32
    %21 = vector.broadcast %cst_19 : f32 to vector<4x1xf32>
    %22 = arith.addf %21, %14 : vector<4x1xf32>
    %23 = arith.addf %22, %16 : vector<4x1xf32>
    %24 = arith.addf %23, %18 : vector<4x1xf32>
    %25 = arith.addf %24, %20 : vector<4x1xf32>
    %cst_20 = arith.constant 6.400000e+01 : f32
    %26 = vector.broadcast %cst_20 : f32 to vector<4x1xf32>
    %27 = arith.divf %25, %26 : vector<4x1xf32>
    %28 = vector.broadcast %27 : vector<4x1xf32> to vector<4x16xf32>
    %29 = arith.subf %3, %28 : vector<4x16xf32>
    %30 = arith.mulf %29, %29 : vector<4x16xf32>
    %cst_21 = arith.constant dense<0.000000e+00> : vector<4xf32>
    %31 = vector.multi_reduction <add>, %30, %cst_21 [1] : vector<4x16xf32> to vector<4xf32>
    %32 = vector.shape_cast %31 : vector<4xf32> to vector<4x1xf32>
    %33 = vector.broadcast %27 : vector<4x1xf32> to vector<4x16xf32>
    %34 = arith.subf %6, %33 : vector<4x16xf32>
    %35 = arith.mulf %34, %34 : vector<4x16xf32>
    %cst_22 = arith.constant dense<0.000000e+00> : vector<4xf32>
    %36 = vector.multi_reduction <add>, %35, %cst_22 [1] : vector<4x16xf32> to vector<4xf32>
    %37 = vector.shape_cast %36 : vector<4xf32> to vector<4x1xf32>
    %38 = vector.broadcast %27 : vector<4x1xf32> to vector<4x16xf32>
    %39 = arith.subf %9, %38 : vector<4x16xf32>
    %40 = arith.mulf %39, %39 : vector<4x16xf32>
    %cst_23 = arith.constant dense<0.000000e+00> : vector<4xf32>
    %41 = vector.multi_reduction <add>, %40, %cst_23 [1] : vector<4x16xf32> to vector<4xf32>
    %42 = vector.shape_cast %41 : vector<4xf32> to vector<4x1xf32>
    %43 = vector.broadcast %27 : vector<4x1xf32> to vector<4x16xf32>
    %44 = arith.subf %12, %43 : vector<4x16xf32>
    %45 = arith.mulf %44, %44 : vector<4x16xf32>
    %cst_24 = arith.constant dense<0.000000e+00> : vector<4xf32>
    %46 = vector.multi_reduction <add>, %45, %cst_24 [1] : vector<4x16xf32> to vector<4xf32>
    %47 = vector.shape_cast %46 : vector<4xf32> to vector<4x1xf32>
    %cst_25 = arith.constant 0.000000e+00 : f32
    %48 = vector.broadcast %cst_25 : f32 to vector<4x1xf32>
    %49 = arith.addf %48, %32 : vector<4x1xf32>
    %50 = arith.addf %49, %37 : vector<4x1xf32>
    %51 = arith.addf %50, %42 : vector<4x1xf32>
    %52 = arith.addf %51, %47 : vector<4x1xf32>
    %cst_26 = arith.constant 6.400000e+01 : f32
    %53 = vector.broadcast %cst_26 : f32 to vector<4x1xf32>
    %54 = arith.divf %52, %53 : vector<4x1xf32>
    %c0_27 = arith.constant 0 : index
    %c0_28 = arith.constant 0 : index
    %55 = vector.load %arg3[%c0_27, %c0_28] : memref<4x1xf32, #tpu.memory_space<vmem>>, vector<4x1xf32>
    %cst_29 = arith.constant 9.99999974E-6 : f32
    %56 = vector.broadcast %cst_29 : f32 to vector<4x1xf32>
    %57 = arith.addf %54, %56 : vector<4x1xf32>
    %58 = math.rsqrt %57 : vector<4x1xf32>
    %59 = arith.mulf %55, %58 : vector<4x1xf32>
    %c0_30 = arith.constant 0 : index
    %c0_31 = arith.constant 0 : index
    %60 = vector.load %arg4[%c0_30, %c0_31] : memref<4x1xf32, #tpu.memory_space<vmem>>, vector<4x1xf32>
    %61 = arith.mulf %27, %59 : vector<4x1xf32>
    %62 = arith.subf %60, %61 : vector<4x1xf32>
    %c0_32 = arith.constant 0 : index
    %c0_33 = arith.constant 0 : index
    %63 = vector.load %arg5[%c0_32, %c0_33] : memref<64x4xf32, #tpu.memory_space<vmem>>, vector<64x4xf32>
    %c0_34 = arith.constant 0 : index
    %c0_35 = arith.constant 0 : index
    %64 = vector.load %arg6[%c0_34, %c0_35] : memref<64x4xf32, #tpu.memory_space<vmem>>, vector<64x4xf32>
    %65 = vector.broadcast %59 : vector<4x1xf32> to vector<4x16xf32>
    %66 = arith.mulf %3, %65 : vector<4x16xf32>
    %67 = vector.broadcast %62 : vector<4x1xf32> to vector<4x16xf32>
    %68 = arith.addf %66, %67 : vector<4x16xf32>
    %cst_36 = arith.constant 0.000000e+00 : f32
    %69 = vector.broadcast %cst_36 : f32 to vector<4x16xf32>
    %70 = arith.maximumf %68, %69 : vector<4x16xf32>
    %71 = vector.broadcast %59 : vector<4x1xf32> to vector<4x16xf32>
    %72 = arith.mulf %9, %71 : vector<4x16xf32>
    %73 = vector.broadcast %62 : vector<4x1xf32> to vector<4x16xf32>
    %74 = arith.addf %72, %73 : vector<4x16xf32>
    %cst_37 = arith.constant 0.000000e+00 : f32
    %75 = vector.broadcast %cst_37 : f32 to vector<4x16xf32>
    %76 = arith.maximumf %74, %75 : vector<4x16xf32>
    %77 = vector.extract_strided_slice %63 {offsets = [0, 0], sizes = [64, 1], strides = [1, 1]} : vector<64x4xf32> to vector<64x1xf32>
    %78 = vector.extract_strided_slice %70 {offsets = [0, 0], sizes = [1, 16], strides = [1, 1]} : vector<4x16xf32> to vector<1x16xf32>
    %79 = vector.broadcast %77 : vector<64x1xf32> to vector<64x16xf32>
    %80 = vector.broadcast %78 : vector<1x16xf32> to vector<64x16xf32>
    %81 = arith.mulf %79, %80 : vector<64x16xf32>
    %82 = vector.extract_strided_slice %63 {offsets = [0, 1], sizes = [64, 1], strides = [1, 1]} : vector<64x4xf32> to vector<64x1xf32>
    %83 = vector.extract_strided_slice %70 {offsets = [1, 0], sizes = [1, 16], strides = [1, 1]} : vector<4x16xf32> to vector<1x16xf32>
    %84 = vector.broadcast %82 : vector<64x1xf32> to vector<64x16xf32>
    %85 = vector.broadcast %83 : vector<1x16xf32> to vector<64x16xf32>
    %86 = arith.mulf %84, %85 : vector<64x16xf32>
    %87 = arith.addf %81, %86 : vector<64x16xf32>
    %88 = vector.extract_strided_slice %63 {offsets = [0, 2], sizes = [64, 1], strides = [1, 1]} : vector<64x4xf32> to vector<64x1xf32>
    %89 = vector.extract_strided_slice %70 {offsets = [2, 0], sizes = [1, 16], strides = [1, 1]} : vector<4x16xf32> to vector<1x16xf32>
    %90 = vector.broadcast %88 : vector<64x1xf32> to vector<64x16xf32>
    %91 = vector.broadcast %89 : vector<1x16xf32> to vector<64x16xf32>
    %92 = arith.mulf %90, %91 : vector<64x16xf32>
    %93 = arith.addf %87, %92 : vector<64x16xf32>
    %94 = vector.extract_strided_slice %63 {offsets = [0, 3], sizes = [64, 1], strides = [1, 1]} : vector<64x4xf32> to vector<64x1xf32>
    %95 = vector.extract_strided_slice %70 {offsets = [3, 0], sizes = [1, 16], strides = [1, 1]} : vector<4x16xf32> to vector<1x16xf32>
    %96 = vector.broadcast %94 : vector<64x1xf32> to vector<64x16xf32>
    %97 = vector.broadcast %95 : vector<1x16xf32> to vector<64x16xf32>
    %98 = arith.mulf %96, %97 : vector<64x16xf32>
    %99 = arith.addf %93, %98 : vector<64x16xf32>
    %c0_38 = arith.constant 0 : index
    %c0_39 = arith.constant 0 : index
    %c0_40 = arith.constant 0 : index
    %100 = vector.load %arg7[%c0_38, %c0_39, %c0_40] : memref<2x64x16xf32, #tpu.memory_space<vmem>>, vector<1x64x16xf32>
    %101 = vector.shape_cast %100 : vector<1x64x16xf32> to vector<64x16xf32>
    %102 = vector.shape_cast %99 : vector<64x16xf32> to vector<1x64x16xf32>
    tpu.vector_store %arg7[%c0_38, %c0_39, %c0_40], %102 {strides = array<i32>} : memref<2x64x16xf32, #tpu.memory_space<vmem>>, vector<1x64x16xf32>,
    %103 = vector.extract_strided_slice %64 {offsets = [0, 0], sizes = [64, 1], strides = [1, 1]} : vector<64x4xf32> to vector<64x1xf32>
    %104 = vector.extract_strided_slice %76 {offsets = [0, 0], sizes = [1, 16], strides = [1, 1]} : vector<4x16xf32> to vector<1x16xf32>
    %105 = vector.broadcast %103 : vector<64x1xf32> to vector<64x16xf32>
    %106 = vector.broadcast %104 : vector<1x16xf32> to vector<64x16xf32>
    %107 = arith.mulf %105, %106 : vector<64x16xf32>
    %108 = vector.extract_strided_slice %64 {offsets = [0, 1], sizes = [64, 1], strides = [1, 1]} : vector<64x4xf32> to vector<64x1xf32>
    %109 = vector.extract_strided_slice %76 {offsets = [1, 0], sizes = [1, 16], strides = [1, 1]} : vector<4x16xf32> to vector<1x16xf32>
    %110 = vector.broadcast %108 : vector<64x1xf32> to vector<64x16xf32>
    %111 = vector.broadcast %109 : vector<1x16xf32> to vector<64x16xf32>
    %112 = arith.mulf %110, %111 : vector<64x16xf32>
    %113 = arith.addf %107, %112 : vector<64x16xf32>
    %114 = vector.extract_strided_slice %64 {offsets = [0, 2], sizes = [64, 1], strides = [1, 1]} : vector<64x4xf32> to vector<64x1xf32>
    %115 = vector.extract_strided_slice %76 {offsets = [2, 0], sizes = [1, 16], strides = [1, 1]} : vector<4x16xf32> to vector<1x16xf32>
    %116 = vector.broadcast %114 : vector<64x1xf32> to vector<64x16xf32>
    %117 = vector.broadcast %115 : vector<1x16xf32> to vector<64x16xf32>
    %118 = arith.mulf %116, %117 : vector<64x16xf32>
    %119 = arith.addf %113, %118 : vector<64x16xf32>
    %120 = vector.extract_strided_slice %64 {offsets = [0, 3], sizes = [64, 1], strides = [1, 1]} : vector<64x4xf32> to vector<64x1xf32>
    %121 = vector.extract_strided_slice %76 {offsets = [3, 0], sizes = [1, 16], strides = [1, 1]} : vector<4x16xf32> to vector<1x16xf32>
    %122 = vector.broadcast %120 : vector<64x1xf32> to vector<64x16xf32>
    %123 = vector.broadcast %121 : vector<1x16xf32> to vector<64x16xf32>
    %124 = arith.mulf %122, %123 : vector<64x16xf32>
    %125 = arith.addf %119, %124 : vector<64x16xf32>
    %c0_41 = arith.constant 0 : index
    %c0_42 = arith.constant 0 : index
    %c0_43 = arith.constant 0 : index
    %126 = vector.load %arg8[%c0_41, %c0_42, %c0_43] : memref<2x64x16xf32, #tpu.memory_space<vmem>>, vector<1x64x16xf32>
    %127 = vector.shape_cast %126 : vector<1x64x16xf32> to vector<64x16xf32>
    %128 = vector.shape_cast %125 : vector<64x16xf32> to vector<1x64x16xf32>
    tpu.vector_store %arg8[%c0_41, %c0_42, %c0_43], %128 {strides = array<i32>} : memref<2x64x16xf32, #tpu.memory_space<vmem>>, vector<1x64x16xf32>,
    %129 = vector.broadcast %59 : vector<4x1xf32> to vector<4x16xf32>
    %130 = arith.mulf %6, %129 : vector<4x16xf32>
    %131 = vector.broadcast %62 : vector<4x1xf32> to vector<4x16xf32>
    %132 = arith.addf %130, %131 : vector<4x16xf32>
    %cst_44 = arith.constant 0.000000e+00 : f32
    %133 = vector.broadcast %cst_44 : f32 to vector<4x16xf32>
    %134 = arith.maximumf %132, %133 : vector<4x16xf32>
    %135 = vector.broadcast %59 : vector<4x1xf32> to vector<4x16xf32>
    %136 = arith.mulf %12, %135 : vector<4x16xf32>
    %137 = vector.broadcast %62 : vector<4x1xf32> to vector<4x16xf32>
    %138 = arith.addf %136, %137 : vector<4x16xf32>
    %cst_45 = arith.constant 0.000000e+00 : f32
    %139 = vector.broadcast %cst_45 : f32 to vector<4x16xf32>
    %140 = arith.maximumf %138, %139 : vector<4x16xf32>
    %141 = vector.extract_strided_slice %63 {offsets = [0, 0], sizes = [64, 1], strides = [1, 1]} : vector<64x4xf32> to vector<64x1xf32>
    %142 = vector.extract_strided_slice %134 {offsets = [0, 0], sizes = [1, 16], strides = [1, 1]} : vector<4x16xf32> to vector<1x16xf32>
    %143 = vector.broadcast %141 : vector<64x1xf32> to vector<64x16xf32>
    %144 = vector.broadcast %142 : vector<1x16xf32> to vector<64x16xf32>
    %145 = arith.mulf %143, %144 : vector<64x16xf32>
    %146 = vector.extract_strided_slice %63 {offsets = [0, 1], sizes = [64, 1], strides = [1, 1]} : vector<64x4xf32> to vector<64x1xf32>
    %147 = vector.extract_strided_slice %134 {offsets = [1, 0], sizes = [1, 16], strides = [1, 1]} : vector<4x16xf32> to vector<1x16xf32>
    %148 = vector.broadcast %146 : vector<64x1xf32> to vector<64x16xf32>
    %149 = vector.broadcast %147 : vector<1x16xf32> to vector<64x16xf32>
    %150 = arith.mulf %148, %149 : vector<64x16xf32>
    %151 = arith.addf %145, %150 : vector<64x16xf32>
    %152 = vector.extract_strided_slice %63 {offsets = [0, 2], sizes = [64, 1], strides = [1, 1]} : vector<64x4xf32> to vector<64x1xf32>
    %153 = vector.extract_strided_slice %134 {offsets = [2, 0], sizes = [1, 16], strides = [1, 1]} : vector<4x16xf32> to vector<1x16xf32>
    %154 = vector.broadcast %152 : vector<64x1xf32> to vector<64x16xf32>
    %155 = vector.broadcast %153 : vector<1x16xf32> to vector<64x16xf32>
    %156 = arith.mulf %154, %155 : vector<64x16xf32>
    %157 = arith.addf %151, %156 : vector<64x16xf32>
    %158 = vector.extract_strided_slice %63 {offsets = [0, 3], sizes = [64, 1], strides = [1, 1]} : vector<64x4xf32> to vector<64x1xf32>
    %159 = vector.extract_strided_slice %134 {offsets = [3, 0], sizes = [1, 16], strides = [1, 1]} : vector<4x16xf32> to vector<1x16xf32>
    %160 = vector.broadcast %158 : vector<64x1xf32> to vector<64x16xf32>
    %161 = vector.broadcast %159 : vector<1x16xf32> to vector<64x16xf32>
    %162 = arith.mulf %160, %161 : vector<64x16xf32>
    %163 = arith.addf %157, %162 : vector<64x16xf32>
    %c1_46 = arith.constant 1 : index
    %c0_47 = arith.constant 0 : index
    %c0_48 = arith.constant 0 : index
    %164 = vector.load %arg7[%c1_46, %c0_47, %c0_48] : memref<2x64x16xf32, #tpu.memory_space<vmem>>, vector<1x64x16xf32>
    %165 = vector.shape_cast %164 : vector<1x64x16xf32> to vector<64x16xf32>
    %166 = vector.shape_cast %163 : vector<64x16xf32> to vector<1x64x16xf32>
    tpu.vector_store %arg7[%c1_46, %c0_47, %c0_48], %166 {strides = array<i32>} : memref<2x64x16xf32, #tpu.memory_space<vmem>>, vector<1x64x16xf32>,
    %167 = vector.extract_strided_slice %64 {offsets = [0, 0], sizes = [64, 1], strides = [1, 1]} : vector<64x4xf32> to vector<64x1xf32>
    %168 = vector.extract_strided_slice %140 {offsets = [0, 0], sizes = [1, 16], strides = [1, 1]} : vector<4x16xf32> to vector<1x16xf32>
    %169 = vector.broadcast %167 : vector<64x1xf32> to vector<64x16xf32>
    %170 = vector.broadcast %168 : vector<1x16xf32> to vector<64x16xf32>
    %171 = arith.mulf %169, %170 : vector<64x16xf32>
    %172 = vector.extract_strided_slice %64 {offsets = [0, 1], sizes = [64, 1], strides = [1, 1]} : vector<64x4xf32> to vector<64x1xf32>
    %173 = vector.extract_strided_slice %140 {offsets = [1, 0], sizes = [1, 16], strides = [1, 1]} : vector<4x16xf32> to vector<1x16xf32>
    %174 = vector.broadcast %172 : vector<64x1xf32> to vector<64x16xf32>
    %175 = vector.broadcast %173 : vector<1x16xf32> to vector<64x16xf32>
    %176 = arith.mulf %174, %175 : vector<64x16xf32>
    %177 = arith.addf %171, %176 : vector<64x16xf32>
    %178 = vector.extract_strided_slice %64 {offsets = [0, 2], sizes = [64, 1], strides = [1, 1]} : vector<64x4xf32> to vector<64x1xf32>
    %179 = vector.extract_strided_slice %140 {offsets = [2, 0], sizes = [1, 16], strides = [1, 1]} : vector<4x16xf32> to vector<1x16xf32>
    %180 = vector.broadcast %178 : vector<64x1xf32> to vector<64x16xf32>
    %181 = vector.broadcast %179 : vector<1x16xf32> to vector<64x16xf32>
    %182 = arith.mulf %180, %181 : vector<64x16xf32>
    %183 = arith.addf %177, %182 : vector<64x16xf32>
    %184 = vector.extract_strided_slice %64 {offsets = [0, 3], sizes = [64, 1], strides = [1, 1]} : vector<64x4xf32> to vector<64x1xf32>
    %185 = vector.extract_strided_slice %140 {offsets = [3, 0], sizes = [1, 16], strides = [1, 1]} : vector<4x16xf32> to vector<1x16xf32>
    %186 = vector.broadcast %184 : vector<64x1xf32> to vector<64x16xf32>
    %187 = vector.broadcast %185 : vector<1x16xf32> to vector<64x16xf32>
    %188 = arith.mulf %186, %187 : vector<64x16xf32>
    %189 = arith.addf %183, %188 : vector<64x16xf32>
    %c1_49 = arith.constant 1 : index
    %c0_50 = arith.constant 0 : index
    %c0_51 = arith.constant 0 : index
    %190 = vector.load %arg8[%c1_49, %c0_50, %c0_51] : memref<2x64x16xf32, #tpu.memory_space<vmem>>, vector<1x64x16xf32>
    %191 = vector.shape_cast %190 : vector<1x64x16xf32> to vector<64x16xf32>
    %192 = vector.shape_cast %189 : vector<64x16xf32> to vector<1x64x16xf32>
    tpu.vector_store %arg8[%c1_49, %c0_50, %c0_51], %192 {strides = array<i32>} : memref<2x64x16xf32, #tpu.memory_space<vmem>>, vector<1x64x16xf32>,
    return
  }
}

module attributes {stable_mosaic.version = 11 : i64} {
  func.func @_pool_kernel(%arg0: i32, %arg1: i32, %arg2: memref<1x32x256xf32, #tpu.memory_space<vmem>>, %arg3: memref<256x16xf32, #tpu.memory_space<vmem>>, %arg4: memref<256x16xf32, #tpu.memory_space<vmem>>, %arg5: memref<1x32x16xf32, #tpu.memory_space<vmem>>, %arg6: memref<1x32x16xf32, #tpu.memory_space<vmem>>) attributes {dimension_semantics = [#tpu.dimension_semantics<parallel>, #tpu.dimension_semantics<parallel>], iteration_bounds = array<i64: 2, 2>, scalar_prefetch = 0 : i64, scratch_operands = 0 : i64, tpu.core_type = #tpu.core_type<tc>, window_params = [{transform_indices = @transform_0, window_bounds = array<i64: 1, 32, 256>}, {pipeline_mode = #tpu.pipeline_mode<synchronous>, transform_indices = @transform_1, window_bounds = array<i64: 256, 16>}, {pipeline_mode = #tpu.pipeline_mode<synchronous>, transform_indices = @transform_2, window_bounds = array<i64: 256, 16>}, {transform_indices = @transform_3, window_bounds = array<i64: 1, 32, 16>}, {transform_indices = @transform_4, window_bounds = array<i64: 1, 32, 16>}]} {
    %c0 = arith.constant 0 : index
    %c0_0 = arith.constant 0 : index
    %c0_1 = arith.constant 0 : index
    %0 = vector.load %arg2[%c0, %c0_0, %c0_1] : memref<1x32x256xf32, #tpu.memory_space<vmem>>, vector<1x32x256xf32>
    %1 = vector.shape_cast %0 : vector<1x32x256xf32> to vector<32x256xf32>
    %c0_2 = arith.constant 0 : index
    %c0_3 = arith.constant 0 : index
    %2 = vector.load %arg3[%c0_2, %c0_3] : memref<256x16xf32, #tpu.memory_space<vmem>>, vector<256x16xf32>
    %cst = arith.constant dense<0.000000e+00> : vector<32x16xf32>
    %3 = tpu.matmul %1, %2, %cst {dimension_numbers = #tpu.dot_dimension_numbers<[1], [0], [0], [1], [0, 0, 1, 1], [], []>} : vector<32x256xf32>, vector<256x16xf32>, vector<32x16xf32> -> vector<32x16xf32>
    %c0_4 = arith.constant 0 : index
    %c0_5 = arith.constant 0 : index
    %c0_6 = arith.constant 0 : index
    %4 = vector.load %arg5[%c0_4, %c0_5, %c0_6] : memref<1x32x16xf32, #tpu.memory_space<vmem>>, vector<1x32x16xf32>
    %5 = vector.shape_cast %4 : vector<1x32x16xf32> to vector<32x16xf32>
    %6 = vector.shape_cast %3 : vector<32x16xf32> to vector<1x32x16xf32>
    tpu.vector_store %arg5[%c0_4, %c0_5, %c0_6], %6 {strides = array<i32>} : memref<1x32x16xf32, #tpu.memory_space<vmem>>, vector<1x32x16xf32>,
    %c0_7 = arith.constant 0 : index
    %c0_8 = arith.constant 0 : index
    %7 = vector.load %arg4[%c0_7, %c0_8] : memref<256x16xf32, #tpu.memory_space<vmem>>, vector<256x16xf32>
    %cst_9 = arith.constant dense<0.000000e+00> : vector<32x16xf32>
    %8 = tpu.matmul %1, %7, %cst_9 {dimension_numbers = #tpu.dot_dimension_numbers<[1], [0], [0], [1], [0, 0, 1, 1], [], []>} : vector<32x256xf32>, vector<256x16xf32>, vector<32x16xf32> -> vector<32x16xf32>
    %c0_10 = arith.constant 0 : index
    %c0_11 = arith.constant 0 : index
    %c0_12 = arith.constant 0 : index
    %9 = vector.load %arg6[%c0_10, %c0_11, %c0_12] : memref<1x32x16xf32, #tpu.memory_space<vmem>>, vector<1x32x16xf32>
    %10 = vector.shape_cast %9 : vector<1x32x16xf32> to vector<32x16xf32>
    %11 = vector.shape_cast %8 : vector<32x16xf32> to vector<1x32x16xf32>
    tpu.vector_store %arg6[%c0_10, %c0_11, %c0_12], %11 {strides = array<i32>} : memref<1x32x16xf32, #tpu.memory_space<vmem>>, vector<1x32x16xf32>,
    return
  }
  func.func @transform_0(%arg0: i32, %arg1: i32) -> (i32, i32, i32) {
    %c0_i32 = arith.constant 0 : i32
    %c0_i32_0 = arith.constant 0 : i32
    return %arg0, %arg1, %c0_i32 : i32, i32, i32
  }
  func.func @transform_1(%arg0: i32, %arg1: i32) -> (i32, i32) {
    %c0_i32 = arith.constant 0 : i32
    %c0_i32_0 = arith.constant 0 : i32
    %c0_i32_1 = arith.constant 0 : i32
    return %c0_i32, %c0_i32_0 : i32, i32
  }
  func.func @transform_2(%arg0: i32, %arg1: i32) -> (i32, i32) {
    %c0_i32 = arith.constant 0 : i32
    %c0_i32_0 = arith.constant 0 : i32
    %c0_i32_1 = arith.constant 0 : i32
    return %c0_i32, %c0_i32_0 : i32, i32
  }
  func.func @transform_3(%arg0: i32, %arg1: i32) -> (i32, i32, i32) {
    %c0_i32 = arith.constant 0 : i32
    %c0_i32_0 = arith.constant 0 : i32
    return %arg0, %arg1, %c0_i32 : i32, i32, i32
  }
  func.func @transform_4(%arg0: i32, %arg1: i32) -> (i32, i32, i32) {
    %c0_i32 = arith.constant 0 : i32
    %c0_i32_0 = arith.constant 0 : i32
    return %arg0, %arg1, %c0_i32 : i32, i32, i32
  }
}

module attributes {stable_mosaic.version = 11 : i64} {
  func.func @_gate_kernel(%arg0: i32, %arg1: i32, %arg2: memref<1x32x256xf32, #tpu.memory_space<vmem>>, %arg3: memref<1x32x16xf32, #tpu.memory_space<vmem>>, %arg4: memref<1x32x16xf32, #tpu.memory_space<vmem>>, %arg5: memref<16x256xf32, #tpu.memory_space<vmem>>, %arg6: memref<16x256xf32, #tpu.memory_space<vmem>>, %arg7: memref<1x32x256xf32, #tpu.memory_space<vmem>>) attributes {dimension_semantics = [#tpu.dimension_semantics<parallel>, #tpu.dimension_semantics<parallel>], iteration_bounds = array<i64: 2, 2>, scalar_prefetch = 0 : i64, scratch_operands = 0 : i64, tpu.core_type = #tpu.core_type<tc>, window_params = [{transform_indices = @transform_0, window_bounds = array<i64: 1, 32, 256>}, {transform_indices = @transform_1, window_bounds = array<i64: 1, 32, 16>}, {transform_indices = @transform_2, window_bounds = array<i64: 1, 32, 16>}, {pipeline_mode = #tpu.pipeline_mode<synchronous>, transform_indices = @transform_3, window_bounds = array<i64: 16, 256>}, {pipeline_mode = #tpu.pipeline_mode<synchronous>, transform_indices = @transform_4, window_bounds = array<i64: 16, 256>}, {transform_indices = @transform_5, window_bounds = array<i64: 1, 32, 256>}]} {
    %c0 = arith.constant 0 : index
    %c0_0 = arith.constant 0 : index
    %c0_1 = arith.constant 0 : index
    %0 = vector.load %arg3[%c0, %c0_0, %c0_1] : memref<1x32x16xf32, #tpu.memory_space<vmem>>, vector<1x32x16xf32>
    %1 = vector.shape_cast %0 : vector<1x32x16xf32> to vector<32x16xf32>
    %c0_2 = arith.constant 0 : index
    %c0_3 = arith.constant 0 : index
    %2 = vector.load %arg5[%c0_2, %c0_3] : memref<16x256xf32, #tpu.memory_space<vmem>>, vector<16x256xf32>
    %cst = arith.constant dense<0.000000e+00> : vector<32x256xf32>
    %3 = tpu.matmul %1, %2, %cst {dimension_numbers = #tpu.dot_dimension_numbers<[1], [0], [0], [1], [0, 0, 1, 1], [], []>} : vector<32x16xf32>, vector<16x256xf32>, vector<32x256xf32> -> vector<32x256xf32>
    %c0_4 = arith.constant 0 : index
    %c0_5 = arith.constant 0 : index
    %c0_6 = arith.constant 0 : index
    %4 = vector.load %arg4[%c0_4, %c0_5, %c0_6] : memref<1x32x16xf32, #tpu.memory_space<vmem>>, vector<1x32x16xf32>
    %5 = vector.shape_cast %4 : vector<1x32x16xf32> to vector<32x16xf32>
    %c0_7 = arith.constant 0 : index
    %c0_8 = arith.constant 0 : index
    %6 = vector.load %arg6[%c0_7, %c0_8] : memref<16x256xf32, #tpu.memory_space<vmem>>, vector<16x256xf32>
    %cst_9 = arith.constant dense<0.000000e+00> : vector<32x256xf32>
    %7 = tpu.matmul %5, %6, %cst_9 {dimension_numbers = #tpu.dot_dimension_numbers<[1], [0], [0], [1], [0, 0, 1, 1], [], []>} : vector<32x16xf32>, vector<16x256xf32>, vector<32x256xf32> -> vector<32x256xf32>
    %8 = arith.addf %3, %7 : vector<32x256xf32>
    %9 = arith.negf %8 : vector<32x256xf32>
    %10 = math.exp %9 : vector<32x256xf32>
    %cst_10 = arith.constant 1.000000e+00 : f32
    %11 = vector.broadcast %cst_10 : f32 to vector<32x256xf32>
    %12 = arith.addf %11, %10 : vector<32x256xf32>
    %13 = arith.divf %11, %12 : vector<32x256xf32>
    %c0_11 = arith.constant 0 : index
    %c0_12 = arith.constant 0 : index
    %c0_13 = arith.constant 0 : index
    %14 = vector.load %arg2[%c0_11, %c0_12, %c0_13] : memref<1x32x256xf32, #tpu.memory_space<vmem>>, vector<1x32x256xf32>
    %15 = vector.shape_cast %14 : vector<1x32x256xf32> to vector<32x256xf32>
    %16 = arith.mulf %15, %13 : vector<32x256xf32>
    %c0_14 = arith.constant 0 : index
    %c0_15 = arith.constant 0 : index
    %c0_16 = arith.constant 0 : index
    %17 = vector.load %arg7[%c0_14, %c0_15, %c0_16] : memref<1x32x256xf32, #tpu.memory_space<vmem>>, vector<1x32x256xf32>
    %18 = vector.shape_cast %17 : vector<1x32x256xf32> to vector<32x256xf32>
    %19 = vector.shape_cast %16 : vector<32x256xf32> to vector<1x32x256xf32>
    tpu.vector_store %arg7[%c0_14, %c0_15, %c0_16], %19 {strides = array<i32>} : memref<1x32x256xf32, #tpu.memory_space<vmem>>, vector<1x32x256xf32>,
    return
  }
  func.func @transform_0(%arg0: i32, %arg1: i32) -> (i32, i32, i32) {
    %c0_i32 = arith.constant 0 : i32
    %c0_i32_0 = arith.constant 0 : i32
    return %arg0, %arg1, %c0_i32 : i32, i32, i32
  }
  func.func @transform_1(%arg0: i32, %arg1: i32) -> (i32, i32, i32) {
    %c0_i32 = arith.constant 0 : i32
    %c0_i32_0 = arith.constant 0 : i32
    return %arg0, %arg1, %c0_i32 : i32, i32, i32
  }
  func.func @transform_2(%arg0: i32, %arg1: i32) -> (i32, i32, i32) {
    %c0_i32 = arith.constant 0 : i32
    %c0_i32_0 = arith.constant 0 : i32
    return %arg0, %arg1, %c0_i32 : i32, i32, i32
  }
  func.func @transform_3(%arg0: i32, %arg1: i32) -> (i32, i32) {
    %c0_i32 = arith.constant 0 : i32
    %c0_i32_0 = arith.constant 0 : i32
    %c0_i32_1 = arith.constant 0 : i32
    return %c0_i32, %c0_i32_0 : i32, i32
  }
  func.func @transform_4(%arg0: i32, %arg1: i32) -> (i32, i32) {
    %c0_i32 = arith.constant 0 : i32
    %c0_i32_0 = arith.constant 0 : i32
    %c0_i32_1 = arith.constant 0 : i32
    return %c0_i32, %c0_i32_0 : i32, i32
  }
  func.func @transform_5(%arg0: i32, %arg1: i32) -> (i32, i32, i32) {
    %c0_i32 = arith.constant 0 : i32
    %c0_i32_0 = arith.constant 0 : i32
    return %arg0, %arg1, %c0_i32 : i32, i32, i32
  }
}

</mosaic_0001>

<llo_original>
// kernel: coord_attention.5
$region0: #{coord_attention.5}
  #allocation0 [shape = 'u32[]', space=smem, size = 0x4, offset = 0x4, fixed_abs, tag = 'smem constant byte address 0x4 - core index']
  #allocation1 [shape = 'u32[144,128]{1,0:T(1,128)}', space=vmem, size = 0x12000, scoped, tag = 'internal scratch']
  %s0 = inlined_call_operand.vmem [shape: f32[2,64,256], index: 0, kind: input, shape index: {}]
  %s1 = inlined_call_operand.vmem [shape: f32[2,64,16], index: 1, kind: input, shape index: {}]
  %s2 = inlined_call_operand.vmem [shape: f32[2,64,16], index: 2, kind: input, shape index: {}]
  %s3 = inlined_call_operand.vmem [shape: f32[16,256], index: 3, kind: input, shape index: {}]
  %s4 = inlined_call_operand.vmem [shape: f32[16,256], index: 4, kind: input, shape index: {}]
  %s5 = inlined_call_operand.vmem [shape: f32[2,64,256], index: 5, kind: output, shape index: {}]
  %s6 = sld [smem:[#allocation0]]
  $region53: #{coord_attention.5} parent=0
    _
  %s8 = ssub.s32 1, %s6
  %s9 = scalar_select 0, %s8, %s6
  loop: start=0, step=1, limit=6
  $region2: #{coord_attention.5} parent=0 // loop_pre_header
    _
  $region3: #{coord_attention.5} parent=0 // loop_header
    %s11 = sphi 0, %s15
    %p12 = scmp.ge.s32.totalorder %s11, 6
    %s18 = sphi 0, %s30
    %s19 = sphi 0, %s26
    %s20 = sphi 0, %s18
    %s21 = sphi 0, %s19
    %s22 = sphi 0, %s20
    %s23 = sphi 0, %s21
    %s35 = sphi 0, %s37
    %s38 = sphi 0, %s35
    %s39 = sphi 0, %s38
    %s55 = sphi 0, %s39
    %s63 = sphi 0, %s65
    %s66 = sphi 0, %s63
    %s67 = sphi 0, %s66
    %s83 = sphi 0, %s67
    %s91 = sphi 0, %s93
    %s94 = sphi 0, %s91
    %s95 = sphi 0, %s94
    %s111 = sphi 0, %s95
    %s115 = sphi 0, %s115
    %s117 = sphi 0, %s115
    %s118 = sphi 0, %s117
    %s132 = sphi 0, %s118
    %s136 = sphi 0, %s136
    %s138 = sphi 0, %s136
    %s139 = sphi 0, %s138
    %s153 = sphi 0, %s139
    %s161 = sphi 0, %s163
    %s164 = sphi 0, %s161
    %s165 = sphi 0, %s164
    %s181 = sphi 0, %s165
  $region4: #{coord_attention.5} parent=0 // loop_header_branch
    %14 = sbr.rel (%p12) target = $region8
  $region5: #{coord_attention.5} parent=0 // loop_body
    %s16 = ssub.s32 %s11, 1
    %s17 = ssub.s32 %s11, 2
    %s24 = sadd.s32 1, %s19
    %p25 = scmp.ge.s32.totalorder %s24, 2
    %s26 = scalar_select %p25, 0, %s24
    %s27 = sadd.s32 1, %s18
    %s28 = scalar_select %p25, %s27, %s18
    %p29 = scmp.ge.s32.totalorder %s28, 2
    %s30 = scalar_select %p29, 0, %s28
    %s31 = ssub.s32 %s18, %s30
    %s32 = ssub.s32 %s19, %s26
    %s33 = sor.u32 %s31, %s32
    %p34 = scmp.eq.s32.totalorder %s33, 0
    %s36 = sadd.s32 %s35, 1
    %s37 = scalar_select %p34, %s35, %s36
    %p40 = pneg %p34
    %p41 = scmp.eq.s32.totalorder %s11, 3
    %p42 = por %p40, %p41
    %p43 = scmp.ne.s32.totalorder %s35, %s38
    %p44 = scmp.eq.s32.totalorder %s11, 0
    %p45 = por %p43, %p44
    %p46 = scmp.ne.s32.totalorder %s35, %s38
    %p47 = scmp.eq.s32.totalorder %s16, 3
    %p48 = por %p46, %p47
    %p49 = scmp.ne.s32.totalorder %s38, %s39
    %p50 = scmp.eq.s32.totalorder %s16, 0
    %p51 = por %p49, %p50
    %p52 = scmp.ne.s32.totalorder %s38, %s39
    %p53 = scmp.eq.s32.totalorder %s17, 3
    %p54 = por %p52, %p53
    %p56 = scmp.ne.s32.totalorder %s39, %s55
    %p57 = scmp.eq.s32.totalorder %s17, 0
    %p58 = por %p56, %p57
    %s59 = ssub.s32 %s18, %s30
    %s60 = ssub.s32 %s19, %s26
    %s61 = sor.u32 %s59, %s60
    %p62 = scmp.eq.s32.totalorder %s61, 0
    %s64 = sadd.s32 %s63, 1
    %s65 = scalar_select %p62, %s63, %s64
    %p68 = pneg %p62
    %p69 = scmp.eq.s32.totalorder %s11, 3
    %p70 = por %p68, %p69
    %p71 = scmp.ne.s32.totalorder %s63, %s66
    %p72 = scmp.eq.s32.totalorder %s11, 0
    %p73 = por %p71, %p72
    %p74 = scmp.ne.s32.totalorder %s63, %s66
    %p75 = scmp.eq.s32.totalorder %s16, 3
    %p76 = por %p74, %p75
    %p77 = scmp.ne.s32.totalorder %s66, %s67
    %p78 = scmp.eq.s32.totalorder %s16, 0
    %p79 = por %p77, %p78
    %p80 = scmp.ne.s32.totalorder %s66, %s67
    %p81 = scmp.eq.s32.totalorder %s17, 3
    %p82 = por %p80, %p81
    %p84 = scmp.ne.s32.totalorder %s67, %s83
    %p85 = scmp.eq.s32.totalorder %s17, 0
    %p86 = por %p84, %p85
    %s87 = ssub.s32 %s18, %s30
    %s88 = ssub.s32 %s19, %s26
    %s89 = sor.u32 %s87, %s88
    %p90 = scmp.eq.s32.totalorder %s89, 0
    %s92 = sadd.s32 %s91, 1
    %s93 = scalar_select %p90, %s91, %s92
    %p96 = pneg %p90
    %p97 = scmp.eq.s32.totalorder %s11, 3
    %p98 = por %p96, %p97
    %p99 = scmp.ne.s32.totalorder %s91, %s94
    %p100 = scmp.eq.s32.totalorder %s11, 0
    %p101 = por %p99, %p100
    %p102 = scmp.ne.s32.totalorder %s91, %s94
    %p103 = scmp.eq.s32.totalorder %s16, 3
    %p104 = por %p102, %p103
    %p105 = scmp.ne.s32.totalorder %s94, %s95
    %p106 = scmp.eq.s32.totalorder %s16, 0
    %p107 = por %p105, %p106
    %p108 = scmp.ne.s32.totalorder %s94, %s95
    %p109 = scmp.eq.s32.totalorder %s17, 3
    %p110 = por %p108, %p109
    %p112 = scmp.ne.s32.totalorder %s95, %s111
    %p113 = scmp.eq.s32.totalorder %s17, 0
    %p114 = por %p112, %p113
    %s116 = sadd.s32 %s115, 1
    %p119 = scmp.eq.s32.totalorder %s11, 3
    %p120 = scmp.ne.s32.totalorder %s115, %s117
    %p121 = scmp.eq.s32.totalorder %s11, 0
    %p122 = por %p120, %p121
    %p123 = scmp.ne.s32.totalorder %s115, %s117
    %p124 = scmp.eq.s32.totalorder %s16, 3
    %p125 = por %p123, %p124
    %p126 = scmp.ne.s32.totalorder %s117, %s118
    %p127 = scmp.eq.s32.totalorder %s16, 0
    %p128 = por %p126, %p127
    %p129 = scmp.ne.s32.totalorder %s117, %s118
    %p130 = scmp.eq.s32.totalorder %s17, 3
    %p131 = por %p129, %p130
    %p133 = scmp.ne.s32.totalorder %s118, %s132
    %p134 = scmp.eq.s32.totalorder %s17, 0
    %p135 = por %p133, %p134
    %s137 = sadd.s32 %s136, 1
    %p140 = scmp.eq.s32.totalorder %s11, 3
    %p141 = scmp.ne.s32.totalorder %s136, %s138
    %p142 = scmp.eq.s32.totalorder %s11, 0
    %p143 = por %p141, %p142
    %p144 = scmp.ne.s32.totalorder %s136, %s138
    %p145 = scmp.eq.s32.totalorder %s16, 3
    %p146 = por %p144, %p145
    %p147 = scmp.ne.s32.totalorder %s138, %s139
    %p148 = scmp.eq.s32.totalorder %s16, 0
    %p149 = por %p147, %p148
    %p150 = scmp.ne.s32.totalorder %s138, %s139
    %p151 = scmp.eq.s32.totalorder %s17, 3
    %p152 = por %p150, %p151
    %p154 = scmp.ne.s32.totalorder %s139, %s153
    %p155 = scmp.eq.s32.totalorder %s17, 0
    %p156 = por %p154, %p155
    %s157 = ssub.s32 %s18, %s30
    %s158 = ssub.s32 %s19, %s26
    %s159 = sor.u32 %s157, %s158
    %p160 = scmp.eq.s32.totalorder %s159, 0
    %s162 = sadd.s32 %s161, 1
    %s163 = scalar_select %p160, %s161, %s162
    %p166 = pneg %p160
    %p167 = scmp.eq.s32.totalorder %s11, 3
    %p168 = por %p166, %p167
    %p169 = scmp.ne.s32.totalorder %s161, %s164
    %p170 = scmp.eq.s32.totalorder %s11, 0
    %p171 = por %p169, %p170
    %p172 = scmp.ne.s32.totalorder %s161, %s164
    %p173 = scmp.eq.s32.totalorder %s16, 3
    %p174 = por %p172, %p173
    %p175 = scmp.ne.s32.totalorder %s164, %s165
    %p176 = scmp.eq.s32.totalorder %s16, 0
    %p177 = por %p175, %p176
    %p178 = scmp.ne.s32.totalorder %s164, %s165
    %p179 = scmp.eq.s32.totalorder %s17, 3
    %p180 = por %p178, %p179
    %p182 = scmp.ne.s32.totalorder %s165, %s181
    %p183 = scmp.eq.s32.totalorder %s17, 0
    %p184 = por %p182, %p183
    %p185 = scmp.le.s32.totalorder 1, %s11
    %p186 = scmp.lt.s32.totalorder %s11, 5
    %p187 = pnand %p185, %p186
    %p188 = pneg %p187
    // Predicated region
    $region9: #{coord_attention.5} parent=5 // pred_check
      _
    $region10: #{coord_attention.5} parent=5 // pred_check_branch
      %190 = sbr.rel (%p187) target = $region12
    $region11: #{coord_attention.5} parent=5 // pred_region
      %s191 = ssub.s32 %s11, 1
      // Predicated region
      $region13: #{coord_attention.5} parent=11 // pred_check
        %p192 = pneg %p128
      $region14: #{coord_attention.5} parent=11 // pred_check_branch
        %194 = sbr.rel (%p192) target = $region16
      $region15: #{coord_attention.5} parent=11 // pred_region
        _
      $region16: #{coord_attention.5} parent=11 // pred_fallthru
        _
      // Predicated region
      $region17: #{coord_attention.5} parent=11 // pred_check
        %p195 = pneg %p149
      $region18: #{coord_attention.5} parent=11 // pred_check_branch
        %197 = sbr.rel (%p195) target = $region20
      $region19: #{coord_attention.5} parent=11 // pred_region
        _
      $region20: #{coord_attention.5} parent=11 // pred_fallthru
        _
    $region12: #{coord_attention.5} parent=5 // pred_fallthru
      _
    %p198 = scmp.lt.s32.totalorder %s11, 4
    // Predicated region
    $region21: #{coord_attention.5} parent=5 // pred_check
      %p199 = pneg %p198
    $region22: #{coord_attention.5} parent=5 // pred_check_branch
      %201 = sbr.rel (%p199) target = $region24
    $region23: #{coord_attention.5} parent=5 // pred_region
      // Predicated region
      $region25: #{coord_attention.5} parent=23 // pred_check
        %p202 = pneg %p45
      $region26: #{coord_attention.5} parent=23 // pred_check_branch
        %204 = sbr.rel (%p202) target = $region28
      $region27: #{coord_attention.5} parent=23 // pred_region
        %s205 = smul.u32 4, %s19
        %p206 = scmp.lt.s32.totalorder %s18, 1
        %s207 = scalar_select %p206, %s18, 1
        %p208 = scmp.lt.s32.totalorder %s205, 7
        %s209 = scalar_select %p208, %s205, 7
        %s210 = smul.addr %s209, 2
        %s211 = smul.addr %s207, 16
        %s212 = sadd.s32 %s210, %s211
        %s213 = smul.addr %s212, 8
        %s214 = scalar_lea.vmem %s0, %s213
        %s215 = smul.u32 4, %s19
      $region28: #{coord_attention.5} parent=23 // pred_fallthru
        _
      // Predicated region
      $region29: #{coord_attention.5} parent=23 // pred_check
        %p216 = pneg %p73
      $region30: #{coord_attention.5} parent=23 // pred_check_branch
        %218 = sbr.rel (%p216) target = $region32
      $region31: #{coord_attention.5} parent=23 // pred_region
        %s219 = smul.u32 4, %s19
        %p220 = scmp.lt.s32.totalorder %s18, 1
        %s221 = scalar_select %p220, %s18, 1
        %p222 = scmp.lt.s32.totalorder %s219, 7
        %s223 = scalar_select %p222, %s219, 7
        %s224 = smul.addr %s221, 8
        %s225 = sadd.s32 %s223, %s224
        %s226 = smul.addr %s225, 8
        %s227 = scalar_lea.vmem %s1, %s226
        %s228 = smul.u32 4, %s19
      $region32: #{coord_attention.5} parent=23 // pred_fallthru
        _
      // Predicated region
      $region33: #{coord_attention.5} parent=23 // pred_check
        %p229 = pneg %p101
      $region34: #{coord_attention.5} parent=23 // pred_check_branch
        %231 = sbr.rel (%p229) target = $region36
      $region35: #{coord_attention.5} parent=23 // pred_region
        %s232 = smul.u32 4, %s19
        %p233 = scmp.lt.s32.totalorder %s18, 1
        %s234 = scalar_select %p233, %s18, 1
        %p235 = scmp.lt.s32.totalorder %s232, 7
        %s236 = scalar_select %p235, %s232, 7
        %s237 = smul.addr %s234, 8
        %s238 = sadd.s32 %s236, %s237
        %s239 = smul.addr %s238, 8
        %s240 = scalar_lea.vmem %s2, %s239
        %s241 = smul.u32 4, %s19
      $region36: #{coord_attention.5} parent=23 // pred_fallthru
        _
    $region24: #{coord_attention.5} parent=5 // pred_fallthru
      _
    %p242 = scmp.le.s32.totalorder 1, %s11
    %p243 = scmp.lt.s32.totalorder %s11, 5
    %p244 = pnand %p242, %p243
    %p245 = pneg %p244
    // Predicated region
    $region37: #{coord_attention.5} parent=5 // pred_check
      _
    $region38: #{coord_attention.5} parent=5 // pred_check_branch
      %247 = sbr.rel (%p244) target = $region40
    $region39: #{coord_attention.5} parent=5 // pred_region
      %s248 = ssub.s32 %s11, 1
      %s249 = smul.u32 4, %s21
      %p250 = scmp.lt.s32.totalorder %s20, 1
      %s251 = scalar_select %p250, %s20, 1
      %p252 = scmp.lt.s32.totalorder %s249, 7
      %s253 = scalar_select %p252, %s249, 7
      %s254 = smul.addr %s253, 2
      %s255 = smul.addr %s251, 16
      %s256 = sadd.s32 %s254, %s255
      %s257 = smul.addr %s256, 8
      %s258 = scalar_lea.vmem %s0, %s257
      %p259 = pneg %p51
      %p260 = pneg %p48
      %s261 = smul.u32 4, %s21
      %p262 = scmp.lt.s32.totalorder %s20, 1
      %s263 = scalar_select %p262, %s20, 1
      %p264 = scmp.lt.s32.totalorder %s261, 7
      %s265 = scalar_select %p264, %s261, 7
      %s266 = smul.addr %s263, 8
      %s267 = sadd.s32 %s265, %s266
      %s268 = smul.addr %s267, 8
      %s269 = scalar_lea.vmem %s1, %s268
      %p270 = pneg %p79
      %p271 = pneg %p76
      %s272 = smul.u32 4, %s21
      %p273 = scmp.lt.s32.totalorder %s20, 1
      %s274 = scalar_select %p273, %s20, 1
      %p275 = scmp.lt.s32.totalorder %s272, 7
      %s276 = scalar_select %p275, %s272, 7
      %s277 = smul.addr %s274, 8
      %s278 = sadd.s32 %s276, %s277
      %s279 = smul.addr %s278, 8
      %s280 = scalar_lea.vmem %s2, %s279
      %p281 = pneg %p107
      %p282 = pneg %p104
      %p283 = pneg %p128
      %p284 = pneg %p125
      %p285 = pneg %p149
      %p286 = pneg %p146
      %p287 = pneg %p177
      %p288 = pneg %p174
      %s289 = smul.u32 4, %s21
      %p290 = scmp.lt.s32.totalorder %s20, 1
      %s291 = scalar_select %p290, %s20, 1
      %p292 = scmp.lt.s32.totalorder %s289, 7
      %s293 = scalar_select %p292, %s289, 7
      %s294 = smul.addr %s293, 2
      %s295 = smul.addr %s291, 16
      %s296 = sadd.s32 %s294, %s295
      %s297 = smul.addr %s296, 8
      %s298 = scalar_lea.vmem %s5, %s297
      %s299 = smul.u32 4, %s21
      %p300 = scmp.lt.s32.totalorder %s20, 1
      %s301 = scalar_select %p300, %s20, 1
      %p302 = scmp.lt.s32.totalorder %s299, 7
      %s303 = scalar_select %p302, %s299, 7
      %s304 = smul.addr %s303, 2
      %s305 = smul.addr %s301, 16
      %s306 = sadd.s32 %s304, %s305
      %s307 = smul.addr %s306, 8
      %s308 = scalar_lea.vmem %s0, %s307
      %s309 = smul.u32 4, %s21
      %s310 = smul.u32 4, %s21
      %p311 = scmp.lt.s32.totalorder %s20, 1
      %s312 = scalar_select %p311, %s20, 1
      %p313 = scmp.lt.s32.totalorder %s310, 7
      %s314 = scalar_select %p313, %s310, 7
      %s315 = smul.addr %s312, 8
      %s316 = sadd.s32 %s314, %s315
      %s317 = smul.addr %s316, 8
      %s318 = scalar_lea.vmem %s1, %s317
      %s319 = smul.u32 4, %s21
      %s320 = smul.u32 4, %s21
      %p321 = scmp.lt.s32.totalorder %s20, 1
      %s322 = scalar_select %p321, %s20, 1
      %p323 = scmp.lt.s32.totalorder %s320, 7
      %s324 = scalar_select %p323, %s320, 7
      %s325 = smul.addr %s322, 8
      %s326 = sadd.s32 %s324, %s325
      %s327 = smul.addr %s326, 8
      %s328 = scalar_lea.vmem %s2, %s327
      %s329 = smul.u32 4, %s21
      %s330 = smul.u32 4, %s21
      %p331 = scmp.lt.s32.totalorder %s20, 1
      %s332 = scalar_select %p331, %s20, 1
      %p333 = scmp.lt.s32.totalorder %s330, 7
      %s334 = scalar_select %p333, %s330, 7
      %s335 = smul.addr %s334, 2
      %s336 = smul.addr %s332, 16
      %s337 = sadd.s32 %s335, %s336
      %s338 = smul.addr %s337, 8
      %s339 = scalar_lea.vmem %s5, %s338
      %s340 = smul.u32 4, %s21
      %v341 = vld [vmem:[%s318] sm:$0xff]
      %v342 = vld [vmem:[%s318 + $0x8] sm:$0xff]
      %v343 = vld [vmem:[%s318 + $0x10] sm:$0xff]
      %v344 = vld [vmem:[%s318 + $0x18] sm:$0xff]
      %v345 = vld [vmem:[%s3] sm:$0xff]
      %v346 = vld [vmem:[%s3 + $0x8] sm:$0xff]
      %v347 = vld [vmem:[%s3 + $0x10] sm:$0xff]
      %v348 = vld [vmem:[%s3 + $0x18] sm:$0xff]
      %v349 = vld [vmem:[%s328] sm:$0xff]
      %v350 = vld [vmem:[%s328 + $0x8] sm:$0xff]
      %v351 = vld [vmem:[%s328 + $0x10] sm:$0xff]
      %v352 = vld [vmem:[%s328 + $0x18] sm:$0xff]
      %v353 = vld [vmem:[%s4] sm:$0xff]
      %v354 = vld [vmem:[%s4 + $0x8] sm:$0xff]
      %v355 = vld [vmem:[%s4 + $0x10] sm:$0xff]
      %v356 = vld [vmem:[%s4 + $0x18] sm:$0xff]
      %vm357 = vcmask 130048
      %v359 = vsel %vm357, %v349, 0
      %v362 = vsel %vm357, %v350, 0
      %v365 = vsel %vm357, %v351, 0
      %v368 = vsel %vm357, %v352, 0
      %370 = vmatprep.subr.mxu0 %v354
      %371 = vmatpush1.msra.mxu0 %v353
      %372 = vmatprep.subr.mxu0 %v356
      %373 = vmatpush1.msra.mxu0 %v355
      %374 = vmatprep.subr.mxu0 0.0
      %375 = vmatpush1.msra.mxu0 0.0
      %376 = vmatprep.subr.mxu0 0.0
      %377 = vmatpush1.msra.mxu0 0.0
      %378 = vmatprep.subr.mxu0 0.0
      %379 = vmatpush1.msra.mxu0 0.0
      %380 = vmatprep.subr.mxu0 0.0
      %381 = vmatpush1.msra.mxu0 0.0
      %382 = vmatprep.subr.mxu0 0.0
      %383 = vmatpush1.msra.mxu0 0.0
      %384 = vmatprep.subr.mxu0 0.0
      %385 = vmatpush1.msra.mxu0 0.0
      %386 = vmatprep.subr.mxu0 0.0
      %387 = vmatpush1.msra.mxu0 0.0
      %388 = vmatprep.subr.mxu0 0.0
      %389 = vmatpush1.msra.mxu0 0.0
      %390 = vmatprep.subr.mxu0 0.0
      %391 = vmatpush1.msra.mxu0 0.0
      %392 = vmatprep.subr.mxu0 0.0
      %393 = vmatpush1.msra.mxu0 0.0
      %394 = vmatprep.subr.mxu0 0.0
      %395 = vmatpush1.msra.mxu0 0.0
      %396 = vmatprep.subr.mxu0 0.0
      %397 = vmatpush1.msra.mxu0 0.0
      %398 = vmatprep.subr.mxu0 0.0
      %399 = vmatpush1.msra.mxu0 0.0
      %400 = vmatprep.subr.mxu0 0.0
      %401 = vmatpush1.msra.mxu0 0.0
      %402 = vmatprep.subr.mxu0 0.0
      %403 = vmatpush1.msra.mxu0 0.0
      %404 = vmatprep.subr.mxu0 0.0
      %405 = vmatpush1.msra.mxu0 0.0
      %406 = vmatprep.subr.mxu0 0.0
      %407 = vmatpush1.msra.mxu0 0.0
      %408 = vmatprep.subr.mxu0 0.0
      %409 = vmatpush1.msra.mxu0 0.0
      %410 = vmatprep.subr.mxu0 0.0
      %411 = vmatpush1.msra.mxu0 0.0
      %412 = vmatprep.subr.mxu0 0.0
      %413 = vmatpush1.msra.mxu0 0.0
      %414 = vmatprep.subr.mxu0 0.0
      %415 = vmatpush1.msra.mxu0 0.0
      %416 = vmatprep.subr.mxu0 0.0
      %417 = vmatpush1.msra.mxu0 0.0
      %418 = vmatprep.subr.mxu0 0.0
      %419 = vmatpush1.msra.mxu0 0.0
      %420 = vmatprep.subr.mxu0 0.0
      %421 = vmatpush1.msra.mxu0 0.0
      %422 = vmatprep.subr.mxu0 0.0
      %423 = vmatpush1.msra.mxu0 0.0
      %424 = vmatprep.subr.mxu0 0.0
      %425 = vmatpush1.msra.mxu0 0.0
      %426 = vmatprep.subr.mxu0 0.0
      %427 = vmatpush1.msra.mxu0 0.0
      %428 = vmatprep.subr.mxu0 0.0
      %429 = vmatpush1.msra.mxu0 0.0
      %430 = vmatprep.subr.mxu0 0.0
      %431 = vmatpush1.msra.mxu0 0.0
      %432 = vmatprep.subr.mxu0 0.0
      %433 = vmatpush1.msra.mxu0 0.0
      %434 = vmatprep.mubr.f32.mxu0 0.0
      %435 = vmatmul.mubr.f32.gmra.mrb[0].mxu0 %v359
      %v436 = vpop.f32.mrb[0].mxu0
      %v437 = vadd.f32 0.0, %v436
      %v438 = vpop.f32.mrb[0].mxu0
      %v439 = vadd.f32 0.0, %v438
      %440 = vmatprep.mubr.f32.mxu0 0.0
      %441 = vmatmul.mubr.f32.gmra.mrb[0].mxu0 %v362
      %v442 = vpop.f32.mrb[0].mxu0
      %v443 = vadd.f32 0.0, %v442
      %v444 = vpop.f32.mrb[0].mxu0
      %v445 = vadd.f32 0.0, %v444
      %446 = vmatprep.mubr.f32.mxu0 0.0
      %447 = vmatmul.mubr.f32.gmra.mrb[0].mxu0 %v365
      %v448 = vpop.f32.mrb[0].mxu0
      %v449 = vadd.f32 0.0, %v448
      %v450 = vpop.f32.mrb[0].mxu0
      %v451 = vadd.f32 0.0, %v450
      %452 = vmatprep.mubr.f32.mxu0 0.0
      %453 = vmatmul.mubr.f32.gmra.mrb[0].mxu0 %v368
      %v454 = vpop.f32.mrb[0].mxu0
      %v455 = vadd.f32 0.0, %v454
      %v456 = vpop.f32.mrb[0].mxu0
      %v457 = vadd.f32 0.0, %v456
      %458 = vdwg.mxu0
      %v460 = vsel %vm357, %v341, 0
      %v463 = vsel %vm357, %v342, 0
      %v466 = vsel %vm357, %v343, 0
      %v469 = vsel %vm357, %v344, 0
      %471 = vmatprep.subr.mxu0 %v346
      %472 = vmatpush1.msra.mxu0 %v345
      %473 = vmatprep.subr.mxu0 %v348
      %474 = vmatpush1.msra.mxu0 %v347
      %475 = vmatprep.subr.mxu0 0.0
      %476 = vmatpush1.msra.mxu0 0.0
      %477 = vmatprep.subr.mxu0 0.0
      %478 = vmatpush1.msra.mxu0 0.0
      %479 = vmatprep.subr.mxu0 0.0
      %480 = vmatpush1.msra.mxu0 0.0
      %481 = vmatprep.subr.mxu0 0.0
      %482 = vmatpush1.msra.mxu0 0.0
      %483 = vmatprep.subr.mxu0 0.0
      %484 = vmatpush1.msra.mxu0 0.0
      %485 = vmatprep.subr.mxu0 0.0
      %486 = vmatpush1.msra.mxu0 0.0
      %487 = vmatprep.subr.mxu0 0.0
      %488 = vmatpush1.msra.mxu0 0.0
      %489 = vmatprep.subr.mxu0 0.0
      %490 = vmatpush1.msra.mxu0 0.0
      %491 = vmatprep.subr.mxu0 0.0
      %492 = vmatpush1.msra.mxu0 0.0
      %493 = vmatprep.subr.mxu0 0.0
      %494 = vmatpush1.msra.mxu0 0.0
      %495 = vmatprep.subr.mxu0 0.0
      %496 = vmatpush1.msra.mxu0 0.0
      %497 = vmatprep.subr.mxu0 0.0
      %498 = vmatpush1.msra.mxu0 0.0
      %499 = vmatprep.subr.mxu0 0.0
      %500 = vmatpush1.msra.mxu0 0.0
      %501 = vmatprep.subr.mxu0 0.0
      %502 = vmatpush1.msra.mxu0 0.0
      %503 = vmatprep.subr.mxu0 0.0
      %504 = vmatpush1.msra.mxu0 0.0
      %505 = vmatprep.subr.mxu0 0.0
      %506 = vmatpush1.msra.mxu0 0.0
      %507 = vmatprep.subr.mxu0 0.0
      %508 = vmatpush1.msra.mxu0 0.0
      %509 = vmatprep.subr.mxu0 0.0
      %510 = vmatpush1.msra.mxu0 0.0
      %511 = vmatprep.subr.mxu0 0.0
      %512 = vmatpush1.msra.mxu0 0.0
      %513 = vmatprep.subr.mxu0 0.0
      %514 = vmatpush1.msra.mxu0 0.0
      %515 = vmatprep.subr.mxu0 0.0
      %516 = vmatpush1.msra.mxu0 0.0
      %517 = vmatprep.subr.mxu0 0.0
      %518 = vmatpush1.msra.mxu0 0.0
      %519 = vmatprep.subr.mxu0 0.0
      %520 = vmatpush1.msra.mxu0 0.0
      %521 = vmatprep.subr.mxu0 0.0
      %522 = vmatpush1.msra.mxu0 0.0
      %523 = vmatprep.subr.mxu0 0.0
      %524 = vmatpush1.msra.mxu0 0.0
      %525 = vmatprep.subr.mxu0 0.0
      %526 = vmatpush1.msra.mxu0 0.0
      %527 = vmatprep.subr.mxu0 0.0
      %528 = vmatpush1.msra.mxu0 0.0
      %529 = vmatprep.subr.mxu0 0.0
      %530 = vmatpush1.msra.mxu0 0.0
      %531 = vmatprep.subr.mxu0 0.0
      %532 = vmatpush1.msra.mxu0 0.0
      %533 = vmatprep.subr.mxu0 0.0
      %534 = vmatpush1.msra.mxu0 0.0
      %535 = vmatprep.mubr.f32.mxu0 0.0
      %536 = vmatmul.mubr.f32.gmra.mrb[0].mxu0 %v460
      %v537 = vpop.f32.mrb[0].mxu0
      %v538 = vadd.f32 %v437, %v537
      %v539 = vpop.f32.mrb[0].mxu0
      %v540 = vadd.f32 %v439, %v539
      %541 = vmatprep.mubr.f32.mxu0 0.0
      %542 = vmatmul.mubr.f32.gmra.mrb[0].mxu0 %v463
      %v543 = vpop.f32.mrb[0].mxu0
      %v544 = vadd.f32 %v443, %v543
      %v545 = vpop.f32.mrb[0].mxu0
      %v546 = vadd.f32 %v445, %v545
      %547 = vmatprep.mubr.f32.mxu0 0.0
      %548 = vmatmul.mubr.f32.gmra.mrb[0].mxu0 %v466
      %v549 = vpop.f32.mrb[0].mxu0
      %v550 = vadd.f32 %v449, %v549
      %v551 = vpop.f32.mrb[0].mxu0
      %v552 = vadd.f32 %v451, %v551
      %553 = vmatprep.mubr.f32.mxu0 0.0
      %554 = vmatmul.mubr.f32.gmra.mrb[0].mxu0 %v469
      %v555 = vpop.f32.mrb[0].mxu0
      %v556 = vadd.f32 %v455, %v555
      %v557 = vpop.f32.mrb[0].mxu0
      %v558 = vadd.f32 %v457, %v557
      %559 = vdwg.mxu0
      %v560 = vxor.u32 %v538, 2147483648
      %v561 = vxor.u32 %v540, 2147483648
      %v562 = vxor.u32 %v544, 2147483648
      %v563 = vxor.u32 %v546, 2147483648
      %v564 = vxor.u32 %v550, 2147483648
      %v565 = vxor.u32 %v552, 2147483648
      %v566 = vxor.u32 %v556, 2147483648
      %v567 = vxor.u32 %v558, 2147483648
      %v568 = vmul.f32 %v560, 1.442695
      %v569 = vpow.pop %v568
      %v570 = vmul.f32 %v561, 1.442695
      %v571 = vpow.pop %v570
      %v572 = vmul.f32 %v562, 1.442695
      %v573 = vpow.pop %v572
      %v574 = vmul.f32 %v563, 1.442695
      %v575 = vpow.pop %v574
      %v576 = vmul.f32 %v564, 1.442695
      %v577 = vpow.pop %v576
      %v578 = vmul.f32 %v565, 1.442695
      %v579 = vpow.pop %v578
      %v580 = vmul.f32 %v566, 1.442695
      %v581 = vpow.pop %v580
      %v582 = vmul.f32 %v567, 1.442695
      %v583 = vpow.pop %v582
      %v584 = vadd.f32 %v569, 1.0
      %v585 = vadd.f32 %v571, 1.0
      %v586 = vadd.f32 %v573, 1.0
      %v587 = vadd.f32 %v575, 1.0
      %v588 = vadd.f32 %v577, 1.0
      %v589 = vadd.f32 %v579, 1.0
      %v590 = vadd.f32 %v581, 1.0
      %v591 = vadd.f32 %v583, 1.0
      %v592 = vrcp.pop %v584
      %v593 = vmul.f32 1.0, %v592
      %v594 = vrcp.pop %v585
      %v595 = vmul.f32 1.0, %v594
      %v596 = vrcp.pop %v586
      %v597 = vmul.f32 1.0, %v596
      %v598 = vrcp.pop %v587
      %v599 = vmul.f32 1.0, %v598
      %v600 = vrcp.pop %v588
      %v601 = vmul.f32 1.0, %v600
      %v602 = vrcp.pop %v589
      %v603 = vmul.f32 1.0, %v602
      %v604 = vrcp.pop %v590
      %v605 = vmul.f32 1.0, %v604
      %v606 = vrcp.pop %v591
      %v607 = vmul.f32 1.0, %v606
      %v608 = vld [vmem:[%s308] sm:$0xff]
      %v609 = vld [vmem:[%s308 + $0x8] sm:$0xff]
      %v610 = vld [vmem:[%s308 + $0x10] sm:$0xff]
      %v611 = vld [vmem:[%s308 + $0x18] sm:$0xff]
      %v612 = vld [vmem:[%s308 + $0x20] sm:$0xff]
      %v613 = vld [vmem:[%s308 + $0x28] sm:$0xff]
      %v614 = vld [vmem:[%s308 + $0x30] sm:$0xff]
      %v615 = vld [vmem:[%s308 + $0x38] sm:$0xff]
      %v616 = vmul.f32 %v608, %v593
      %v617 = vmul.f32 %v609, %v595
      %v618 = vmul.f32 %v610, %v597
      %v619 = vmul.f32 %v611, %v599
      %v620 = vmul.f32 %v612, %v601
      %v621 = vmul.f32 %v613, %v603
      %v622 = vmul.f32 %v614, %v605
      %v623 = vmul.f32 %v615, %v607
      %624 = vst [vmem:[%s339] sm:$0xff] %v616
      %625 = vst [vmem:[%s339 + $0x8] sm:$0xff] %v617
      %626 = vst [vmem:[%s339 + $0x10] sm:$0xff] %v618
      %627 = vst [vmem:[%s339 + $0x18] sm:$0xff] %v619
      %628 = vst [vmem:[%s339 + $0x20] sm:$0xff] %v620
      %629 = vst [vmem:[%s339 + $0x28] sm:$0xff] %v621
      %630 = vst [vmem:[%s339 + $0x30] sm:$0xff] %v622
      %631 = vst [vmem:[%s339 + $0x38] sm:$0xff] %v623
      %s632 = smul.u32 4, %s21
      %p633 = scmp.lt.s32.totalorder %s20, 1
      %s634 = scalar_select %p633, %s20, 1
      %p635 = scmp.lt.s32.totalorder %s632, 7
      %s636 = scalar_select %p635, %s632, 7
      %s637 = smul.addr %s636, 2
      %s638 = smul.addr %s634, 16
      %s639 = sadd.s32 %s637, %s638
      %s640 = smul.addr %s639, 8
      %s641 = scalar_lea.vmem %s5, %s640
      // Predicated region
      $region41: #{coord_attention.5} parent=39 // pred_check
        %p642 = pneg %p174
      $region42: #{coord_attention.5} parent=39 // pred_check_branch
        %644 = sbr.rel (%p642) target = $region44
      $region43: #{coord_attention.5} parent=39 // pred_region
        %s645 = smul.u32 4, %s21
      $region44: #{coord_attention.5} parent=39 // pred_fallthru
        _
    $region40: #{coord_attention.5} parent=5 // pred_fallthru
      _
    %p646 = scmp.le.s32.totalorder 2, %s11
    // Predicated region
    $region45: #{coord_attention.5} parent=5 // pred_check
      %p647 = pneg %p646
    $region46: #{coord_attention.5} parent=5 // pred_check_branch
      %649 = sbr.rel (%p647) target = $region48
    $region47: #{coord_attention.5} parent=5 // pred_region
      %s650 = ssub.s32 %s11, 2
      // Predicated region
      $region49: #{coord_attention.5} parent=47 // pred_check
        %p651 = pneg %p180
      $region50: #{coord_attention.5} parent=47 // pred_check_branch
        %653 = sbr.rel (%p651) target = $region52
      $region51: #{coord_attention.5} parent=47 // pred_region
        %s654 = smul.u32 4, %s23
        %p655 = scmp.lt.s32.totalorder %s22, 1
        %s656 = scalar_select %p655, %s22, 1
        %p657 = scmp.lt.s32.totalorder %s654, 7
        %s658 = scalar_select %p657, %s654, 7
        %s659 = smul.addr %s658, 2
        %s660 = smul.addr %s656, 16
        %s661 = sadd.s32 %s659, %s660
        %s662 = smul.addr %s661, 8
        %s663 = scalar_lea.vmem %s5, %s662
      $region52: #{coord_attention.5} parent=47 // pred_fallthru
        _
    $region48: #{coord_attention.5} parent=5 // pred_fallthru
      _
  $region6: #{coord_attention.5} parent=0 // loop_footer
    %s15 = sadd.s32 1, %s11
  $region7: #{coord_attention.5} parent=0 // loop_footer_branch
    %10 = sbr.rel target = $region3
  $region8: #{coord_attention.5} parent=0 // loop_exit
    _

// kernel: coord_attention.3
$region0: #{coord_attention.3}
  #allocation0 [shape = 'u32[]', space=smem, size = 0x4, offset = 0x4, fixed_abs, tag = 'smem constant byte address 0x4 - core index']
  #allocation1 [shape = 'u32[144,128]{1,0:T(1,128)}', space=vmem, size = 0x12000, scoped, tag = 'internal scratch']
  %s0 = inlined_call_operand.vmem [shape: f32[2,64,256], index: 0, kind: input, shape index: {}]
  %s1 = inlined_call_operand.vmem [shape: f32[256,16], index: 1, kind: input, shape index: {}]
  %s2 = inlined_call_operand.vmem [shape: f32[256,16], index: 2, kind: input, shape index: {}]
  %s3 = inlined_call_operand.vmem [shape: f32[2,64,16], index: 3, kind: output, shape index: {0}]
  %s4 = inlined_call_operand.vmem [shape: f32[2,64,16], index: 4, kind: output, shape index: {1}]
  %5 = xla_tuple %s3, %s4
  %s6 = sld [smem:[#allocation0]]
  $region53: #{coord_attention.3} parent=0
    _
  %s8 = ssub.s32 1, %s6
  %s9 = scalar_select 0, %s8, %s6
  loop: start=0, step=1, limit=6
  $region2: #{coord_attention.3} parent=0 // loop_pre_header
    _
  $region3: #{coord_attention.3} parent=0 // loop_header
    %s11 = sphi 0, %s15
    %p12 = scmp.ge.s32.totalorder %s11, 6
    %s18 = sphi 0, %s30
    %s19 = sphi 0, %s26
    %s20 = sphi 0, %s18
    %s21 = sphi 0, %s19
    %s22 = sphi 0, %s20
    %s23 = sphi 0, %s21
    %s35 = sphi 0, %s37
    %s38 = sphi 0, %s35
    %s39 = sphi 0, %s38
    %s55 = sphi 0, %s39
    %s59 = sphi 0, %s59
    %s61 = sphi 0, %s59
    %s62 = sphi 0, %s61
    %s76 = sphi 0, %s62
    %s80 = sphi 0, %s80
    %s82 = sphi 0, %s80
    %s83 = sphi 0, %s82
    %s97 = sphi 0, %s83
    %s105 = sphi 0, %s107
    %s108 = sphi 0, %s105
    %s109 = sphi 0, %s108
    %s125 = sphi 0, %s109
    %s133 = sphi 0, %s135
    %s136 = sphi 0, %s133
    %s137 = sphi 0, %s136
    %s153 = sphi 0, %s137
  $region4: #{coord_attention.3} parent=0 // loop_header_branch
    %14 = sbr.rel (%p12) target = $region8
  $region5: #{coord_attention.3} parent=0 // loop_body
    %s16 = ssub.s32 %s11, 1
    %s17 = ssub.s32 %s11, 2
    %s24 = sadd.s32 1, %s19
    %p25 = scmp.ge.s32.totalorder %s24, 2
    %s26 = scalar_select %p25, 0, %s24
    %s27 = sadd.s32 1, %s18
    %s28 = scalar_select %p25, %s27, %s18
    %p29 = scmp.ge.s32.totalorder %s28, 2
    %s30 = scalar_select %p29, 0, %s28
    %s31 = ssub.s32 %s18, %s30
    %s32 = ssub.s32 %s19, %s26
    %s33 = sor.u32 %s31, %s32
    %p34 = scmp.eq.s32.totalorder %s33, 0
    %s36 = sadd.s32 %s35, 1
    %s37 = scalar_select %p34, %s35, %s36
    %p40 = pneg %p34
    %p41 = scmp.eq.s32.totalorder %s11, 3
    %p42 = por %p40, %p41
    %p43 = scmp.ne.s32.totalorder %s35, %s38
    %p44 = scmp.eq.s32.totalorder %s11, 0
    %p45 = por %p43, %p44
    %p46 = scmp.ne.s32.totalorder %s35, %s38
    %p47 = scmp.eq.s32.totalorder %s16, 3
    %p48 = por %p46, %p47
    %p49 = scmp.ne.s32.totalorder %s38, %s39
    %p50 = scmp.eq.s32.totalorder %s16, 0
    %p51 = por %p49, %p50
    %p52 = scmp.ne.s32.totalorder %s38, %s39
    %p53 = scmp.eq.s32.totalorder %s17, 3
    %p54 = por %p52, %p53
    %p56 = scmp.ne.s32.totalorder %s39, %s55
    %p57 = scmp.eq.s32.totalorder %s17, 0
    %p58 = por %p56, %p57
    %s60 = sadd.s32 %s59, 1
    %p63 = scmp.eq.s32.totalorder %s11, 3
    %p64 = scmp.ne.s32.totalorder %s59, %s61
    %p65 = scmp.eq.s32.totalorder %s11, 0
    %p66 = por %p64, %p65
    %p67 = scmp.ne.s32.totalorder %s59, %s61
    %p68 = scmp.eq.s32.totalorder %s16, 3
    %p69 = por %p67, %p68
    %p70 = scmp.ne.s32.totalorder %s61, %s62
    %p71 = scmp.eq.s32.totalorder %s16, 0
    %p72 = por %p70, %p71
    %p73 = scmp.ne.s32.totalorder %s61, %s62
    %p74 = scmp.eq.s32.totalorder %s17, 3
    %p75 = por %p73, %p74
    %p77 = scmp.ne.s32.totalorder %s62, %s76
    %p78 = scmp.eq.s32.totalorder %s17, 0
    %p79 = por %p77, %p78
    %s81 = sadd.s32 %s80, 1
    %p84 = scmp.eq.s32.totalorder %s11, 3
    %p85 = scmp.ne.s32.totalorder %s80, %s82
    %p86 = scmp.eq.s32.totalorder %s11, 0
    %p87 = por %p85, %p86
    %p88 = scmp.ne.s32.totalorder %s80, %s82
    %p89 = scmp.eq.s32.totalorder %s16, 3
    %p90 = por %p88, %p89
    %p91 = scmp.ne.s32.totalorder %s82, %s83
    %p92 = scmp.eq.s32.totalorder %s16, 0
    %p93 = por %p91, %p92
    %p94 = scmp.ne.s32.totalorder %s82, %s83
    %p95 = scmp.eq.s32.totalorder %s17, 3
    %p96 = por %p94, %p95
    %p98 = scmp.ne.s32.totalorder %s83, %s97
    %p99 = scmp.eq.s32.totalorder %s17, 0
    %p100 = por %p98, %p99
    %s101 = ssub.s32 %s18, %s30
    %s102 = ssub.s32 %s19, %s26
    %s103 = sor.u32 %s101, %s102
    %p104 = scmp.eq.s32.totalorder %s103, 0
    %s106 = sadd.s32 %s105, 1
    %s107 = scalar_select %p104, %s105, %s106
    %p110 = pneg %p104
    %p111 = scmp.eq.s32.totalorder %s11, 3
    %p112 = por %p110, %p111
    %p113 = scmp.ne.s32.totalorder %s105, %s108
    %p114 = scmp.eq.s32.totalorder %s11, 0
    %p115 = por %p113, %p114
    %p116 = scmp.ne.s32.totalorder %s105, %s108
    %p117 = scmp.eq.s32.totalorder %s16, 3
    %p118 = por %p116, %p117
    %p119 = scmp.ne.s32.totalorder %s108, %s109
    %p120 = scmp.eq.s32.totalorder %s16, 0
    %p121 = por %p119, %p120
    %p122 = scmp.ne.s32.totalorder %s108, %s109
    %p123 = scmp.eq.s32.totalorder %s17, 3
    %p124 = por %p122, %p123
    %p126 = scmp.ne.s32.totalorder %s109, %s125
    %p127 = scmp.eq.s32.totalorder %s17, 0
    %p128 = por %p126, %p127
    %s129 = ssub.s32 %s18, %s30
    %s130 = ssub.s32 %s19, %s26
    %s131 = sor.u32 %s129, %s130
    %p132 = scmp.eq.s32.totalorder %s131, 0
    %s134 = sadd.s32 %s133, 1
    %s135 = scalar_select %p132, %s133, %s134
    %p138 = pneg %p132
    %p139 = scmp.eq.s32.totalorder %s11, 3
    %p140 = por %p138, %p139
    %p141 = scmp.ne.s32.totalorder %s133, %s136
    %p142 = scmp.eq.s32.totalorder %s11, 0
    %p143 = por %p141, %p142
    %p144 = scmp.ne.s32.totalorder %s133, %s136
    %p145 = scmp.eq.s32.totalorder %s16, 3
    %p146 = por %p144, %p145
    %p147 = scmp.ne.s32.totalorder %s136, %s137
    %p148 = scmp.eq.s32.totalorder %s16, 0
    %p149 = por %p147, %p148
    %p150 = scmp.ne.s32.totalorder %s136, %s137
    %p151 = scmp.eq.s32.totalorder %s17, 3
    %p152 = por %p150, %p151
    %p154 = scmp.ne.s32.totalorder %s137, %s153
    %p155 = scmp.eq.s32.totalorder %s17, 0
    %p156 = por %p154, %p155
    %p157 = scmp.le.s32.totalorder 1, %s11
    %p158 = scmp.lt.s32.totalorder %s11, 5
    %p159 = pnand %p157, %p158
    %p160 = pneg %p159
    // Predicated region
    $region9: #{coord_attention.3} parent=5 // pred_check
      _
    $region10: #{coord_attention.3} parent=5 // pred_check_branch
      %162 = sbr.rel (%p159) target = $region12
    $region11: #{coord_attention.3} parent=5 // pred_region
      %s163 = ssub.s32 %s11, 1
      // Predicated region
      $region13: #{coord_attention.3} parent=11 // pred_check
        %p164 = pneg %p72
      $region14: #{coord_attention.3} parent=11 // pred_check_branch
        %166 = sbr.rel (%p164) target = $region16
      $region15: #{coord_attention.3} parent=11 // pred_region
        _
      $region16: #{coord_attention.3} parent=11 // pred_fallthru
        _
      // Predicated region
      $region17: #{coord_attention.3} parent=11 // pred_check
        %p167 = pneg %p93
      $region18: #{coord_attention.3} parent=11 // pred_check_branch
        %169 = sbr.rel (%p167) target = $region20
      $region19: #{coord_attention.3} parent=11 // pred_region
        _
      $region20: #{coord_attention.3} parent=11 // pred_fallthru
        _
    $region12: #{coord_attention.3} parent=5 // pred_fallthru
      _
    %p170 = scmp.lt.s32.totalorder %s11, 4
    // Predicated region
    $region21: #{coord_attention.3} parent=5 // pred_check
      %p171 = pneg %p170
    $region22: #{coord_attention.3} parent=5 // pred_check_branch
      %173 = sbr.rel (%p171) target = $region24
    $region23: #{coord_attention.3} parent=5 // pred_region
      // Predicated region
      $region25: #{coord_attention.3} parent=23 // pred_check
        %p174 = pneg %p45
      $region26: #{coord_attention.3} parent=23 // pred_check_branch
        %176 = sbr.rel (%p174) target = $region28
      $region27: #{coord_attention.3} parent=23 // pred_region
        %s177 = smul.u32 4, %s19
        %p178 = scmp.lt.s32.totalorder %s18, 1
        %s179 = scalar_select %p178, %s18, 1
        %p180 = scmp.lt.s32.totalorder %s177, 7
        %s181 = scalar_select %p180, %s177, 7
        %s182 = smul.addr %s181, 2
        %s183 = smul.addr %s179, 16
        %s184 = sadd.s32 %s182, %s183
        %s185 = smul.addr %s184, 8
        %s186 = scalar_lea.vmem %s0, %s185
        %s187 = smul.u32 4, %s19
      $region28: #{coord_attention.3} parent=23 // pred_fallthru
        _
    $region24: #{coord_attention.3} parent=5 // pred_fallthru
      _
    %p188 = scmp.le.s32.totalorder 1, %s11
    %p189 = scmp.lt.s32.totalorder %s11, 5
    %p190 = pnand %p188, %p189
    %p191 = pneg %p190
    // Predicated region
    $region29: #{coord_attention.3} parent=5 // pred_check
      _
    $region30: #{coord_attention.3} parent=5 // pred_check_branch
      %193 = sbr.rel (%p190) target = $region32
    $region31: #{coord_attention.3} parent=5 // pred_region
      %s194 = ssub.s32 %s11, 1
      %s195 = smul.u32 4, %s21
      %p196 = scmp.lt.s32.totalorder %s20, 1
      %s197 = scalar_select %p196, %s20, 1
      %p198 = scmp.lt.s32.totalorder %s195, 7
      %s199 = scalar_select %p198, %s195, 7
      %s200 = smul.addr %s199, 2
      %s201 = smul.addr %s197, 16
      %s202 = sadd.s32 %s200, %s201
      %s203 = smul.addr %s202, 8
      %s204 = scalar_lea.vmem %s0, %s203
      %p205 = pneg %p51
      %p206 = pneg %p48
      %p207 = pneg %p72
      %p208 = pneg %p69
      %p209 = pneg %p93
      %p210 = pneg %p90
      %p211 = pneg %p121
      %p212 = pneg %p118
      %s213 = smul.u32 4, %s21
      %p214 = scmp.lt.s32.totalorder %s20, 1
      %s215 = scalar_select %p214, %s20, 1
      %p216 = scmp.lt.s32.totalorder %s213, 7
      %s217 = scalar_select %p216, %s213, 7
      %s218 = smul.addr %s215, 8
      %s219 = sadd.s32 %s217, %s218
      %s220 = smul.addr %s219, 8
      %s221 = scalar_lea.vmem %s3, %s220
      %p222 = pneg %p149
      %p223 = pneg %p146
      %s224 = smul.u32 4, %s21
      %p225 = scmp.lt.s32.totalorder %s20, 1
      %s226 = scalar_select %p225, %s20, 1
      %p227 = scmp.lt.s32.totalorder %s224, 7
      %s228 = scalar_select %p227, %s224, 7
      %s229 = smul.addr %s226, 8
      %s230 = sadd.s32 %s228, %s229
      %s231 = smul.addr %s230, 8
      %s232 = scalar_lea.vmem %s4, %s231
      %s233 = smul.u32 4, %s21
      %p234 = scmp.lt.s32.totalorder %s20, 1
      %s235 = scalar_select %p234, %s20, 1
      %p236 = scmp.lt.s32.totalorder %s233, 7
      %s237 = scalar_select %p236, %s233, 7
      %s238 = smul.addr %s237, 2
      %s239 = smul.addr %s235, 16
      %s240 = sadd.s32 %s238, %s239
      %s241 = smul.addr %s240, 8
      %s242 = scalar_lea.vmem %s0, %s241
      %s243 = smul.u32 4, %s21
      %s244 = smul.u32 4, %s21
      %p245 = scmp.lt.s32.totalorder %s20, 1
      %s246 = scalar_select %p245, %s20, 1
      %p247 = scmp.lt.s32.totalorder %s244, 7
      %s248 = scalar_select %p247, %s244, 7
      %s249 = smul.addr %s246, 8
      %s250 = sadd.s32 %s248, %s249
      %s251 = smul.addr %s250, 8
      %s252 = scalar_lea.vmem %s3, %s251
      %s253 = smul.u32 4, %s21
      %s254 = smul.u32 4, %s21
      %p255 = scmp.lt.s32.totalorder %s20, 1
      %s256 = scalar_select %p255, %s20, 1
      %p257 = scmp.lt.s32.totalorder %s254, 7
      %s258 = scalar_select %p257, %s254, 7
      %s259 = smul.addr %s256, 8
      %s260 = sadd.s32 %s258, %s259
      %s261 = smul.addr %s260, 8
      %s262 = scalar_lea.vmem %s4, %s261
      %s263 = smul.u32 4, %s21
      %v264 = vld [vmem:[%s242] sm:$0xff]
      %v265 = vld [vmem:[%s242 + $0x8] sm:$0xff]
      %v266 = vld [vmem:[%s242 + $0x10] sm:$0xff]
      %v267 = vld [vmem:[%s242 + $0x18] sm:$0xff]
      %v268 = vld [vmem:[%s242 + $0x20] sm:$0xff]
      %v269 = vld [vmem:[%s242 + $0x28] sm:$0xff]
      %v270 = vld [vmem:[%s242 + $0x30] sm:$0xff]
      %v271 = vld [vmem:[%s242 + $0x38] sm:$0xff]
      %v272 = vld [vmem:[%s1] sm:$0xff]
      %v273 = vld [vmem:[%s1 + $0x8] sm:$0xff]
      %v274 = vld [vmem:[%s1 + $0x10] sm:$0xff]
      %v275 = vld [vmem:[%s1 + $0x18] sm:$0xff]
      %v276 = vld [vmem:[%s1 + $0x20] sm:$0xff]
      %v277 = vld [vmem:[%s1 + $0x28] sm:$0xff]
      %v278 = vld [vmem:[%s1 + $0x30] sm:$0xff]
      %v279 = vld [vmem:[%s1 + $0x38] sm:$0xff]
      %v280 = vld [vmem:[%s1 + $0x40] sm:$0xff]
      %v281 = vld [vmem:[%s1 + $0x48] sm:$0xff]
      %v282 = vld [vmem:[%s1 + $0x50] sm:$0xff]
      %v283 = vld [vmem:[%s1 + $0x58] sm:$0xff]
      %v284 = vld [vmem:[%s1 + $0x60] sm:$0xff]
      %v285 = vld [vmem:[%s1 + $0x68] sm:$0xff]
      %v286 = vld [vmem:[%s1 + $0x70] sm:$0xff]
      %v287 = vld [vmem:[%s1 + $0x78] sm:$0xff]
      %v288 = vld [vmem:[%s1 + $0x80] sm:$0xff]
      %v289 = vld [vmem:[%s1 + $0x88] sm:$0xff]
      %v290 = vld [vmem:[%s1 + $0x90] sm:$0xff]
      %v291 = vld [vmem:[%s1 + $0x98] sm:$0xff]
      %v292 = vld [vmem:[%s1 + $0xa0] sm:$0xff]
      %v293 = vld [vmem:[%s1 + $0xa8] sm:$0xff]
      %v294 = vld [vmem:[%s1 + $0xb0] sm:$0xff]
      %v295 = vld [vmem:[%s1 + $0xb8] sm:$0xff]
      %v296 = vld [vmem:[%s1 + $0xc0] sm:$0xff]
      %v297 = vld [vmem:[%s1 + $0xc8] sm:$0xff]
      %v298 = vld [vmem:[%s1 + $0xd0] sm:$0xff]
      %v299 = vld [vmem:[%s1 + $0xd8] sm:$0xff]
      %v300 = vld [vmem:[%s1 + $0xe0] sm:$0xff]
      %v301 = vld [vmem:[%s1 + $0xe8] sm:$0xff]
      %v302 = vld [vmem:[%s1 + $0xf0] sm:$0xff]
      %v303 = vld [vmem:[%s1 + $0xf8] sm:$0xff]
      %304 = vmatprep.subr.mxu0 0.0
      %305 = vmatpush1.msra.mxu0 %v272
      %306 = vmatprep.subr.mxu0 0.0
      %307 = vmatpush1.msra.mxu0 %v273
      %308 = vmatprep.subr.mxu0 0.0
      %309 = vmatpush1.msra.mxu0 %v274
      %310 = vmatprep.subr.mxu0 0.0
      %311 = vmatpush1.msra.mxu0 %v275
      %312 = vmatprep.subr.mxu0 0.0
      %313 = vmatpush1.msra.mxu0 %v276
      %314 = vmatprep.subr.mxu0 0.0
      %315 = vmatpush1.msra.mxu0 %v277
      %316 = vmatprep.subr.mxu0 0.0
      %317 = vmatpush1.msra.mxu0 %v278
      %318 = vmatprep.subr.mxu0 0.0
      %319 = vmatpush1.msra.mxu0 %v279
      %320 = vmatprep.subr.mxu0 0.0
      %321 = vmatpush1.msra.mxu0 %v280
      %322 = vmatprep.subr.mxu0 0.0
      %323 = vmatpush1.msra.mxu0 %v281
      %324 = vmatprep.subr.mxu0 0.0
      %325 = vmatpush1.msra.mxu0 %v282
      %326 = vmatprep.subr.mxu0 0.0
      %327 = vmatpush1.msra.mxu0 %v283
      %328 = vmatprep.subr.mxu0 0.0
      %329 = vmatpush1.msra.mxu0 %v284
      %330 = vmatprep.subr.mxu0 0.0
      %331 = vmatpush1.msra.mxu0 %v285
      %332 = vmatprep.subr.mxu0 0.0
      %333 = vmatpush1.msra.mxu0 %v286
      %334 = vmatprep.subr.mxu0 0.0
      %335 = vmatpush1.msra.mxu0 %v287
      %336 = vmatprep.subr.mxu0 0.0
      %337 = vmatpush1.msra.mxu0 %v288
      %338 = vmatprep.subr.mxu0 0.0
      %339 = vmatpush1.msra.mxu0 %v289
      %340 = vmatprep.subr.mxu0 0.0
      %341 = vmatpush1.msra.mxu0 %v290
      %342 = vmatprep.subr.mxu0 0.0
      %343 = vmatpush1.msra.mxu0 %v291
      %344 = vmatprep.subr.mxu0 0.0
      %345 = vmatpush1.msra.mxu0 %v292
      %346 = vmatprep.subr.mxu0 0.0
      %347 = vmatpush1.msra.mxu0 %v293
      %348 = vmatprep.subr.mxu0 0.0
      %349 = vmatpush1.msra.mxu0 %v294
      %350 = vmatprep.subr.mxu0 0.0
      %351 = vmatpush1.msra.mxu0 %v295
      %352 = vmatprep.subr.mxu0 0.0
      %353 = vmatpush1.msra.mxu0 %v296
      %354 = vmatprep.subr.mxu0 0.0
      %355 = vmatpush1.msra.mxu0 %v297
      %356 = vmatprep.subr.mxu0 0.0
      %357 = vmatpush1.msra.mxu0 %v298
      %358 = vmatprep.subr.mxu0 0.0
      %359 = vmatpush1.msra.mxu0 %v299
      %360 = vmatprep.subr.mxu0 0.0
      %361 = vmatpush1.msra.mxu0 %v300
      %362 = vmatprep.subr.mxu0 0.0
      %363 = vmatpush1.msra.mxu0 %v301
      %364 = vmatprep.subr.mxu0 0.0
      %365 = vmatpush1.msra.mxu0 %v302
      %366 = vmatprep.subr.mxu0 0.0
      %367 = vmatpush1.msra.mxu0 %v303
      %368 = vmatprep.mubr.f32.mxu0 %v265
      %369 = vmatmul.mubr.f32.gmra.mrb[0].mxu0 %v264
      %v370 = vpop.f32.mrb[0].mxu0
      %v371 = vadd.f32 0.0, %v370
      %v372 = vpop.f32.mrb[0].mxu0
      %373 = vmatprep.mubr.f32.mxu0 %v267
      %374 = vmatmul.mubr.f32.gmra.mrb[0].mxu0 %v266
      %v375 = vpop.f32.mrb[0].mxu0
      %v376 = vadd.f32 0.0, %v375
      %v377 = vpop.f32.mrb[0].mxu0
      %378 = vmatprep.mubr.f32.mxu0 %v269
      %379 = vmatmul.mubr.f32.gmra.mrb[0].mxu0 %v268
      %v380 = vpop.f32.mrb[0].mxu0
      %v381 = vadd.f32 0.0, %v380
      %v382 = vpop.f32.mrb[0].mxu0
      %383 = vmatprep.mubr.f32.mxu0 %v271
      %384 = vmatmul.mubr.f32.gmra.mrb[0].mxu0 %v270
      %v385 = vpop.f32.mrb[0].mxu0
      %v386 = vadd.f32 0.0, %v385
      %v387 = vpop.f32.mrb[0].mxu0
      %388 = vdwg.mxu0
      %vm389 = vcmask 130048
      %390 = vst.msk [vmem:[%s252] sm:$0xff] %vm389, %v371
      %391 = vst.msk [vmem:[%s252 + $0x8] sm:$0xff] %vm389, %v376
      %392 = vst.msk [vmem:[%s252 + $0x10] sm:$0xff] %vm389, %v381
      %393 = vst.msk [vmem:[%s252 + $0x18] sm:$0xff] %vm389, %v386
      %v394 = vld [vmem:[%s2] sm:$0xff]
      %v395 = vld [vmem:[%s2 + $0x8] sm:$0xff]
      %v396 = vld [vmem:[%s2 + $0x10] sm:$0xff]
      %v397 = vld [vmem:[%s2 + $0x18] sm:$0xff]
      %v398 = vld [vmem:[%s2 + $0x20] sm:$0xff]
      %v399 = vld [vmem:[%s2 + $0x28] sm:$0xff]
      %v400 = vld [vmem:[%s2 + $0x30] sm:$0xff]
      %v401 = vld [vmem:[%s2 + $0x38] sm:$0xff]
      %v402 = vld [vmem:[%s2 + $0x40] sm:$0xff]
      %v403 = vld [vmem:[%s2 + $0x48] sm:$0xff]
      %v404 = vld [vmem:[%s2 + $0x50] sm:$0xff]
      %v405 = vld [vmem:[%s2 + $0x58] sm:$0xff]
      %v406 = vld [vmem:[%s2 + $0x60] sm:$0xff]
      %v407 = vld [vmem:[%s2 + $0x68] sm:$0xff]
      %v408 = vld [vmem:[%s2 + $0x70] sm:$0xff]
      %v409 = vld [vmem:[%s2 + $0x78] sm:$0xff]
      %v410 = vld [vmem:[%s2 + $0x80] sm:$0xff]
      %v411 = vld [vmem:[%s2 + $0x88] sm:$0xff]
      %v412 = vld [vmem:[%s2 + $0x90] sm:$0xff]
      %v413 = vld [vmem:[%s2 + $0x98] sm:$0xff]
      %v414 = vld [vmem:[%s2 + $0xa0] sm:$0xff]
      %v415 = vld [vmem:[%s2 + $0xa8] sm:$0xff]
      %v416 = vld [vmem:[%s2 + $0xb0] sm:$0xff]
      %v417 = vld [vmem:[%s2 + $0xb8] sm:$0xff]
      %v418 = vld [vmem:[%s2 + $0xc0] sm:$0xff]
      %v419 = vld [vmem:[%s2 + $0xc8] sm:$0xff]
      %v420 = vld [vmem:[%s2 + $0xd0] sm:$0xff]
      %v421 = vld [vmem:[%s2 + $0xd8] sm:$0xff]
      %v422 = vld [vmem:[%s2 + $0xe0] sm:$0xff]
      %v423 = vld [vmem:[%s2 + $0xe8] sm:$0xff]
      %v424 = vld [vmem:[%s2 + $0xf0] sm:$0xff]
      %v425 = vld [vmem:[%s2 + $0xf8] sm:$0xff]
      %426 = vmatprep.subr.mxu0 0.0
      %427 = vmatpush1.msra.mxu0 %v394
      %428 = vmatprep.subr.mxu0 0.0
      %429 = vmatpush1.msra.mxu0 %v395
      %430 = vmatprep.subr.mxu0 0.0
      %431 = vmatpush1.msra.mxu0 %v396
      %432 = vmatprep.subr.mxu0 0.0
      %433 = vmatpush1.msra.mxu0 %v397
      %434 = vmatprep.subr.mxu0 0.0
      %435 = vmatpush1.msra.mxu0 %v398
      %436 = vmatprep.subr.mxu0 0.0
      %437 = vmatpush1.msra.mxu0 %v399
      %438 = vmatprep.subr.mxu0 0.0
      %439 = vmatpush1.msra.mxu0 %v400
      %440 = vmatprep.subr.mxu0 0.0
      %441 = vmatpush1.msra.mxu0 %v401
      %442 = vmatprep.subr.mxu0 0.0
      %443 = vmatpush1.msra.mxu0 %v402
      %444 = vmatprep.subr.mxu0 0.0
      %445 = vmatpush1.msra.mxu0 %v403
      %446 = vmatprep.subr.mxu0 0.0
      %447 = vmatpush1.msra.mxu0 %v404
      %448 = vmatprep.subr.mxu0 0.0
      %449 = vmatpush1.msra.mxu0 %v405
      %450 = vmatprep.subr.mxu0 0.0
      %451 = vmatpush1.msra.mxu0 %v406
      %452 = vmatprep.subr.mxu0 0.0
      %453 = vmatpush1.msra.mxu0 %v407
      %454 = vmatprep.subr.mxu0 0.0
      %455 = vmatpush1.msra.mxu0 %v408
      %456 = vmatprep.subr.mxu0 0.0
      %457 = vmatpush1.msra.mxu0 %v409
      %458 = vmatprep.subr.mxu0 0.0
      %459 = vmatpush1.msra.mxu0 %v410
      %460 = vmatprep.subr.mxu0 0.0
      %461 = vmatpush1.msra.mxu0 %v411
      %462 = vmatprep.subr.mxu0 0.0
      %463 = vmatpush1.msra.mxu0 %v412
      %464 = vmatprep.subr.mxu0 0.0
      %465 = vmatpush1.msra.mxu0 %v413
      %466 = vmatprep.subr.mxu0 0.0
      %467 = vmatpush1.msra.mxu0 %v414
      %468 = vmatprep.subr.mxu0 0.0
      %469 = vmatpush1.msra.mxu0 %v415
      %470 = vmatprep.subr.mxu0 0.0
      %471 = vmatpush1.msra.mxu0 %v416
      %472 = vmatprep.subr.mxu0 0.0
      %473 = vmatpush1.msra.mxu0 %v417
      %474 = vmatprep.subr.mxu0 0.0
      %475 = vmatpush1.msra.mxu0 %v418
      %476 = vmatprep.subr.mxu0 0.0
      %477 = vmatpush1.msra.mxu0 %v419
      %478 = vmatprep.subr.mxu0 0.0
      %479 = vmatpush1.msra.mxu0 %v420
      %480 = vmatprep.subr.mxu0 0.0
      %481 = vmatpush1.msra.mxu0 %v421
      %482 = vmatprep.subr.mxu0 0.0
      %483 = vmatpush1.msra.mxu0 %v422
      %484 = vmatprep.subr.mxu0 0.0
      %485 = vmatpush1.msra.mxu0 %v423
      %486 = vmatprep.subr.mxu0 0.0
      %487 = vmatpush1.msra.mxu0 %v424
      %488 = vmatprep.subr.mxu0 0.0
      %489 = vmatpush1.msra.mxu0 %v425
      %490 = vmatprep.mubr.f32.mxu0 %v265
      %491 = vmatmul.mubr.f32.gmra.mrb[0].mxu0 %v264
      %v492 = vpop.f32.mrb[0].mxu0
      %v493 = vadd.f32 0.0, %v492
      %v494 = vpop.f32.mrb[0].mxu0
      %495 = vmatprep.mubr.f32.mxu0 %v267
      %496 = vmatmul.mubr.f32.gmra.mrb[0].mxu0 %v266
      %v497 = vpop.f32.mrb[0].mxu0
      %v498 = vadd.f32 0.0, %v497
      %v499 = vpop.f32.mrb[0].mxu0
      %500 = vmatprep.mubr.f32.mxu0 %v269
      %501 = vmatmul.mubr.f32.gmra.mrb[0].mxu0 %v268
      %v502 = vpop.f32.mrb[0].mxu0
      %v503 = vadd.f32 0.0, %v502
      %v504 = vpop.f32.mrb[0].mxu0
      %505 = vmatprep.mubr.f32.mxu0 %v271
      %506 = vmatmul.mubr.f32.gmra.mrb[0].mxu0 %v270
      %v507 = vpop.f32.mrb[0].mxu0
      %v508 = vadd.f32 0.0, %v507
      %v509 = vpop.f32.mrb[0].mxu0
      %510 = vdwg.mxu0
      %511 = vst.msk [vmem:[%s262] sm:$0xff] %vm389, %v493
      %512 = vst.msk [vmem:[%s262 + $0x8] sm:$0xff] %vm389, %v498
      %513 = vst.msk [vmem:[%s262 + $0x10] sm:$0xff] %vm389, %v503
      %514 = vst.msk [vmem:[%s262 + $0x18] sm:$0xff] %vm389, %v508
      %s515 = smul.u32 4, %s21
      %p516 = scmp.lt.s32.totalorder %s20, 1
      %s517 = scalar_select %p516, %s20, 1
      %p518 = scmp.lt.s32.totalorder %s515, 7
      %s519 = scalar_select %p518, %s515, 7
      %s520 = smul.addr %s517, 8
      %s521 = sadd.s32 %s519, %s520
      %s522 = smul.addr %s521, 8
      %s523 = scalar_lea.vmem %s3, %s522
      %s524 = smul.u32 4, %s21
      %p525 = scmp.lt.s32.totalorder %s20, 1
      %s526 = scalar_select %p525, %s20, 1
      %p527 = scmp.lt.s32.totalorder %s524, 7
      %s528 = scalar_select %p527, %s524, 7
      %s529 = smul.addr %s526, 8
      %s530 = sadd.s32 %s528, %s529
      %s531 = smul.addr %s530, 8
      %s532 = scalar_lea.vmem %s4, %s531
      // Predicated region
      $region33: #{coord_attention.3} parent=31 // pred_check
        %p533 = pneg %p118
      $region34: #{coord_attention.3} parent=31 // pred_check_branch
        %535 = sbr.rel (%p533) target = $region36
      $region35: #{coord_attention.3} parent=31 // pred_region
        %s536 = smul.u32 4, %s21
      $region36: #{coord_attention.3} parent=31 // pred_fallthru
        _
      // Predicated region
      $region37: #{coord_attention.3} parent=31 // pred_check
        %p537 = pneg %p146
      $region38: #{coord_attention.3} parent=31 // pred_check_branch
        %539 = sbr.rel (%p537) target = $region40
      $region39: #{coord_attention.3} parent=31 // pred_region
        %s540 = smul.u32 4, %s21
      $region40: #{coord_attention.3} parent=31 // pred_fallthru
        _
    $region32: #{coord_attention.3} parent=5 // pred_fallthru
      _
    %p541 = scmp.le.s32.totalorder 2, %s11
    // Predicated region
    $region41: #{coord_attention.3} parent=5 // pred_check
      %p542 = pneg %p541
    $region42: #{coord_attention.3} parent=5 // pred_check_branch
      %544 = sbr.rel (%p542) target = $region44
    $region43: #{coord_attention.3} parent=5 // pred_region
      %s545 = ssub.s32 %s11, 2
      // Predicated region
      $region45: #{coord_attention.3} parent=43 // pred_check
        %p546 = pneg %p124
      $region46: #{coord_attention.3} parent=43 // pred_check_branch
        %548 = sbr.rel (%p546) target = $region48
      $region47: #{coord_attention.3} parent=43 // pred_region
        %s549 = smul.u32 4, %s23
        %p550 = scmp.lt.s32.totalorder %s22, 1
        %s551 = scalar_select %p550, %s22, 1
        %p552 = scmp.lt.s32.totalorder %s549, 7
        %s553 = scalar_select %p552, %s549, 7
        %s554 = smul.addr %s551, 8
        %s555 = sadd.s32 %s553, %s554
        %s556 = smul.addr %s555, 8
        %s557 = scalar_lea.vmem %s3, %s556
      $region48: #{coord_attention.3} parent=43 // pred_fallthru
        _
      // Predicated region
      $region49: #{coord_attention.3} parent=43 // pred_check
        %p558 = pneg %p152
      $region50: #{coord_attention.3} parent=43 // pred_check_branch
        %560 = sbr.rel (%p558) target = $region52
      $region51: #{coord_attention.3} parent=43 // pred_region
        %s561 = smul.u32 4, %s23
        %p562 = scmp.lt.s32.totalorder %s22, 1
        %s563 = scalar_select %p562, %s22, 1
        %p564 = scmp.lt.s32.totalorder %s561, 7
        %s565 = scalar_select %p564, %s561, 7
        %s566 = smul.addr %s563, 8
        %s567 = sadd.s32 %s565, %s566
        %s568 = smul.addr %s567, 8
        %s569 = scalar_lea.vmem %s4, %s568
      $region52: #{coord_attention.3} parent=43 // pred_fallthru
        _
    $region44: #{coord_attention.3} parent=5 // pred_fallthru
      _
  $region6: #{coord_attention.3} parent=0 // loop_footer
    %s15 = sadd.s32 1, %s11
  $region7: #{coord_attention.3} parent=0 // loop_footer_branch
    %10 = sbr.rel target = $region3
  $region8: #{coord_attention.3} parent=0 // loop_exit
    _

// kernel: coord_attention.4
$region0: #{coord_attention.4}
  #allocation0 [shape = 'u32[]', space=smem, size = 0x4, offset = 0x4, fixed_abs, tag = 'smem constant byte address 0x4 - core index']
  #allocation1 [shape = 'u32[144,128]{1,0:T(1,128)}', space=vmem, size = 0x12000, scoped, tag = 'internal scratch']
  %s0 = inlined_call_operand.vmem [shape: f32[2,64,16], index: 0, kind: input, shape index: {}]
  %s1 = inlined_call_operand.vmem [shape: f32[2,64,16], index: 1, kind: input, shape index: {}]
  %s2 = inlined_call_operand.vmem [shape: f32[4,64], index: 2, kind: input, shape index: {}]
  %s3 = inlined_call_operand.vmem [shape: f32[4,1], index: 3, kind: input, shape index: {}]
  %s4 = inlined_call_operand.vmem [shape: f32[4,1], index: 4, kind: input, shape index: {}]
  %s5 = inlined_call_operand.vmem [shape: f32[64,4], index: 5, kind: input, shape index: {}]
  %s6 = inlined_call_operand.vmem [shape: f32[64,4], index: 6, kind: input, shape index: {}]
  %s7 = inlined_call_operand.vmem [shape: f32[2,64,16], index: 7, kind: output, shape index: {0}]
  %s8 = inlined_call_operand.vmem [shape: f32[2,64,16], index: 8, kind: output, shape index: {1}]
  %9 = xla_tuple %s7, %s8
  %s10 = sld [smem:[#allocation0]]
  $region46: #{coord_attention.4} parent=0
    _
  %s12 = ssub.s32 1, %s10
  %s13 = scalar_select 0, %s12, %s10
  // Predicated region
  $region2: #{coord_attention.4} parent=0 // pred_check
    _
  $region3: #{coord_attention.4} parent=0 // pred_check_branch
    %15 = sbr.rel (0) target = $region5
  $region4: #{coord_attention.4} parent=0 // pred_region
    _
  $region5: #{coord_attention.4} parent=0 // pred_fallthru
    _
  // Predicated region
  $region6: #{coord_attention.4} parent=0 // pred_check
    _
  $region7: #{coord_attention.4} parent=0 // pred_check_branch
    %17 = sbr.rel (0) target = $region9
  $region8: #{coord_attention.4} parent=0 // pred_region
    _
  $region9: #{coord_attention.4} parent=0 // pred_fallthru
    _
  // Predicated region
  $region10: #{coord_attention.4} parent=0 // pred_check
    _
  $region11: #{coord_attention.4} parent=0 // pred_check_branch
    %19 = sbr.rel (0) target = $region13
  $region12: #{coord_attention.4} parent=0 // pred_region
    _
  $region13: #{coord_attention.4} parent=0 // pred_fallthru
    _
  // Predicated region
  $region14: #{coord_attention.4} parent=0 // pred_check
    _
  $region15: #{coord_attention.4} parent=0 // pred_check_branch
    %21 = sbr.rel (0) target = $region17
  $region16: #{coord_attention.4} parent=0 // pred_region
    _
  $region17: #{coord_attention.4} parent=0 // pred_fallthru
    _
  // Predicated region
  $region18: #{coord_attention.4} parent=0 // pred_check
    _
  $region19: #{coord_attention.4} parent=0 // pred_check_branch
    %23 = sbr.rel (0) target = $region21
  $region20: #{coord_attention.4} parent=0 // pred_region
    _
  $region21: #{coord_attention.4} parent=0 // pred_fallthru
    _
  // Predicated region
  $region22: #{coord_attention.4} parent=0 // pred_check
    _
  $region23: #{coord_attention.4} parent=0 // pred_check_branch
    %25 = sbr.rel (0) target = $region25
  $region24: #{coord_attention.4} parent=0 // pred_region
    _
  $region25: #{coord_attention.4} parent=0 // pred_fallthru
    _
  // Predicated region
  $region26: #{coord_attention.4} parent=0 // pred_check
    _
  $region27: #{coord_attention.4} parent=0 // pred_check_branch
    %27 = sbr.rel (0) target = $region29
  $region28: #{coord_attention.4} parent=0 // pred_region
    _
  $region29: #{coord_attention.4} parent=0 // pred_fallthru
    _
  %v28 = vld [vmem:[%s2] sm:$0xf]
  %v29 = vld [vmem:[%s0] sm:$0xff]
  %v30 = vld [vmem:[%s0 + $0x8] sm:$0xff]
  %v31 = vld [vmem:[%s0 + $0x10] sm:$0xff]
  %v32 = vld [vmem:[%s0 + $0x18] sm:$0xff]
  %v33 = vld [vmem:[%s0 + $0x20] sm:$0xff]
  %v34 = vld [vmem:[%s0 + $0x28] sm:$0xff]
  %v35 = vld [vmem:[%s0 + $0x30] sm:$0xff]
  %v36 = vld [vmem:[%s0 + $0x38] sm:$0xff]
  %vm37 = vcmask 523264
  %v39 = vsel %vm37, %v28, 0
  %41 = vmatprep.subr.mxu0 0.0
  %42 = vmatpush1.msra.mxu0 %v29
  %43 = vmatprep.subr.mxu0 0.0
  %44 = vmatpush1.msra.mxu0 %v30
  %45 = vmatprep.subr.mxu0 0.0
  %46 = vmatpush1.msra.mxu0 %v31
  %47 = vmatprep.subr.mxu0 0.0
  %48 = vmatpush1.msra.mxu0 %v32
  %49 = vmatprep.subr.mxu0 0.0
  %50 = vmatpush1.msra.mxu0 %v33
  %51 = vmatprep.subr.mxu0 0.0
  %52 = vmatpush1.msra.mxu0 %v34
  %53 = vmatprep.subr.mxu0 0.0
  %54 = vmatpush1.msra.mxu0 %v35
  %55 = vmatprep.subr.mxu0 0.0
  %56 = vmatpush1.msra.mxu0 %v36
  %57 = vmatprep.subr.mxu0 0.0
  %58 = vmatpush1.msra.mxu0 0.0
  %59 = vmatprep.subr.mxu0 0.0
  %60 = vmatpush1.msra.mxu0 0.0
  %61 = vmatprep.subr.mxu0 0.0
  %62 = vmatpush1.msra.mxu0 0.0
  %63 = vmatprep.subr.mxu0 0.0
  %64 = vmatpush1.msra.mxu0 0.0
  %65 = vmatprep.subr.mxu0 0.0
  %66 = vmatpush1.msra.mxu0 0.0
  %67 = vmatprep.subr.mxu0 0.0
  %68 = vmatpush1.msra.mxu0 0.0
  %69 = vmatprep.subr.mxu0 0.0
  %70 = vmatpush1.msra.mxu0 0.0
  %71 = vmatprep.subr.mxu0 0.0
  %72 = vmatpush1.msra.mxu0 0.0
  %73 = vmatprep.subr.mxu0 0.0
  %74 = vmatpush1.msra.mxu0 0.0
  %75 = vmatprep.subr.mxu0 0.0
  %76 = vmatpush1.msra.mxu0 0.0
  %77 = vmatprep.subr.mxu0 0.0
  %78 = vmatpush1.msra.mxu0 0.0
  %79 = vmatprep.subr.mxu0 0.0
  %80 = vmatpush1.msra.mxu0 0.0
  %81 = vmatprep.subr.mxu0 0.0
  %82 = vmatpush1.msra.mxu0 0.0
  %83 = vmatprep.subr.mxu0 0.0
  %84 = vmatpush1.msra.mxu0 0.0
  %85 = vmatprep.subr.mxu0 0.0
  %86 = vmatpush1.msra.mxu0 0.0
  %87 = vmatprep.subr.mxu0 0.0
  %88 = vmatpush1.msra.mxu0 0.0
  %89 = vmatprep.subr.mxu0 0.0
  %90 = vmatpush1.msra.mxu0 0.0
  %91 = vmatprep.subr.mxu0 0.0
  %92 = vmatpush1.msra.mxu0 0.0
  %93 = vmatprep.subr.mxu0 0.0
  %94 = vmatpush1.msra.mxu0 0.0
  %95 = vmatprep.subr.mxu0 0.0
  %96 = vmatpush1.msra.mxu0 0.0
  %97 = vmatprep.subr.mxu0 0.0
  %98 = vmatpush1.msra.mxu0 0.0
  %99 = vmatprep.subr.mxu0 0.0
  %100 = vmatpush1.msra.mxu0 0.0
  %101 = vmatprep.subr.mxu0 0.0
  %102 = vmatpush1.msra.mxu0 0.0
  %103 = vmatprep.subr.mxu0 0.0
  %104 = vmatpush1.msra.mxu0 0.0
  %105 = vmatprep.mubr.f32.mxu0 0.0
  %106 = vmatmul.mubr.f32.gmra.mrb[0].mxu0 %v39
  %v107 = vpop.f32.mrb[0].mxu0
  %v108 = vadd.f32 0.0, %v107
  %v109 = vpop.f32.mrb[0].mxu0
  %110 = vdwg.mxu0
  %s111 = scalar_lea.vmem %s0, 64
  %v112 = vld [vmem:[%s111] sm:$0xff]
  %v113 = vld [vmem:[%s111 + $0x8] sm:$0xff]
  %v114 = vld [vmem:[%s111 + $0x10] sm:$0xff]
  %v115 = vld [vmem:[%s111 + $0x18] sm:$0xff]
  %v116 = vld [vmem:[%s111 + $0x20] sm:$0xff]
  %v117 = vld [vmem:[%s111 + $0x28] sm:$0xff]
  %v118 = vld [vmem:[%s111 + $0x30] sm:$0xff]
  %v119 = vld [vmem:[%s111 + $0x38] sm:$0xff]
  %120 = vmatprep.subr.mxu0 0.0
  %121 = vmatpush1.msra.mxu0 %v112
  %122 = vmatprep.subr.mxu0 0.0
  %123 = vmatpush1.msra.mxu0 %v113
  %124 = vmatprep.subr.mxu0 0.0
  %125 = vmatpush1.msra.mxu0 %v114
  %126 = vmatprep.subr.mxu0 0.0
  %127 = vmatpush1.msra.mxu0 %v115
  %128 = vmatprep.subr.mxu0 0.0
  %129 = vmatpush1.msra.mxu0 %v116
  %130 = vmatprep.subr.mxu0 0.0
  %131 = vmatpush1.msra.mxu0 %v117
  %132 = vmatprep.subr.mxu0 0.0
  %133 = vmatpush1.msra.mxu0 %v118
  %134 = vmatprep.subr.mxu0 0.0
  %135 = vmatpush1.msra.mxu0 %v119
  %136 = vmatprep.subr.mxu0 0.0
  %137 = vmatpush1.msra.mxu0 0.0
  %138 = vmatprep.subr.mxu0 0.0
  %139 = vmatpush1.msra.mxu0 0.0
  %140 = vmatprep.subr.mxu0 0.0
  %141 = vmatpush1.msra.mxu0 0.0
  %142 = vmatprep.subr.mxu0 0.0
  %143 = vmatpush1.msra.mxu0 0.0
  %144 = vmatprep.subr.mxu0 0.0
  %145 = vmatpush1.msra.mxu0 0.0
  %146 = vmatprep.subr.mxu0 0.0
  %147 = vmatpush1.msra.mxu0 0.0
  %148 = vmatprep.subr.mxu0 0.0
  %149 = vmatpush1.msra.mxu0 0.0
  %150 = vmatprep.subr.mxu0 0.0
  %151 = vmatpush1.msra.mxu0 0.0
  %152 = vmatprep.subr.mxu0 0.0
  %153 = vmatpush1.msra.mxu0 0.0
  %154 = vmatprep.subr.mxu0 0.0
  %155 = vmatpush1.msra.mxu0 0.0
  %156 = vmatprep.subr.mxu0 0.0
  %157 = vmatpush1.msra.mxu0 0.0
  %158 = vmatprep.subr.mxu0 0.0
  %159 = vmatpush1.msra.mxu0 0.0
  %160 = vmatprep.subr.mxu0 0.0
  %161 = vmatpush1.msra.mxu0 0.0
  %162 = vmatprep.subr.mxu0 0.0
  %163 = vmatpush1.msra.mxu0 0.0
  %164 = vmatprep.subr.mxu0 0.0
  %165 = vmatpush1.msra.mxu0 0.0
  %166 = vmatprep.subr.mxu0 0.0
  %167 = vmatpush1.msra.mxu0 0.0
  %168 = vmatprep.subr.mxu0 0.0
  %169 = vmatpush1.msra.mxu0 0.0
  %170 = vmatprep.subr.mxu0 0.0
  %171 = vmatpush1.msra.mxu0 0.0
  %172 = vmatprep.subr.mxu0 0.0
  %173 = vmatpush1.msra.mxu0 0.0
  %174 = vmatprep.subr.mxu0 0.0
  %175 = vmatpush1.msra.mxu0 0.0
  %176 = vmatprep.subr.mxu0 0.0
  %177 = vmatpush1.msra.mxu0 0.0
  %178 = vmatprep.subr.mxu0 0.0
  %179 = vmatpush1.msra.mxu0 0.0
  %180 = vmatprep.subr.mxu0 0.0
  %181 = vmatpush1.msra.mxu0 0.0
  %182 = vmatprep.subr.mxu0 0.0
  %183 = vmatpush1.msra.mxu0 0.0
  %184 = vmatprep.mubr.f32.mxu0 0.0
  %185 = vmatmul.mubr.f32.gmra.mrb[0].mxu0 %v39
  %v186 = vpop.f32.mrb[0].mxu0
  %v187 = vadd.f32 0.0, %v186
  %v188 = vpop.f32.mrb[0].mxu0
  %189 = vdwg.mxu0
  %v190 = vld [vmem:[%s1] sm:$0xff]
  %v191 = vld [vmem:[%s1 + $0x8] sm:$0xff]
  %v192 = vld [vmem:[%s1 + $0x10] sm:$0xff]
  %v193 = vld [vmem:[%s1 + $0x18] sm:$0xff]
  %v194 = vld [vmem:[%s1 + $0x20] sm:$0xff]
  %v195 = vld [vmem:[%s1 + $0x28] sm:$0xff]
  %v196 = vld [vmem:[%s1 + $0x30] sm:$0xff]
  %v197 = vld [vmem:[%s1 + $0x38] sm:$0xff]
  %198 = vmatprep.subr.mxu0 0.0
  %199 = vmatpush1.msra.mxu0 %v190
  %200 = vmatprep.subr.mxu0 0.0
  %201 = vmatpush1.msra.mxu0 %v191
  %202 = vmatprep.subr.mxu0 0.0
  %203 = vmatpush1.msra.mxu0 %v192
  %204 = vmatprep.subr.mxu0 0.0
  %205 = vmatpush1.msra.mxu0 %v193
  %206 = vmatprep.subr.mxu0 0.0
  %207 = vmatpush1.msra.mxu0 %v194
  %208 = vmatprep.subr.mxu0 0.0
  %209 = vmatpush1.msra.mxu0 %v195
  %210 = vmatprep.subr.mxu0 0.0
  %211 = vmatpush1.msra.mxu0 %v196
  %212 = vmatprep.subr.mxu0 0.0
  %213 = vmatpush1.msra.mxu0 %v197
  %214 = vmatprep.subr.mxu0 0.0
  %215 = vmatpush1.msra.mxu0 0.0
  %216 = vmatprep.subr.mxu0 0.0
  %217 = vmatpush1.msra.mxu0 0.0
  %218 = vmatprep.subr.mxu0 0.0
  %219 = vmatpush1.msra.mxu0 0.0
  %220 = vmatprep.subr.mxu0 0.0
  %221 = vmatpush1.msra.mxu0 0.0
  %222 = vmatprep.subr.mxu0 0.0
  %223 = vmatpush1.msra.mxu0 0.0
  %224 = vmatprep.subr.mxu0 0.0
  %225 = vmatpush1.msra.mxu0 0.0
  %226 = vmatprep.subr.mxu0 0.0
  %227 = vmatpush1.msra.mxu0 0.0
  %228 = vmatprep.subr.mxu0 0.0
  %229 = vmatpush1.msra.mxu0 0.0
  %230 = vmatprep.subr.mxu0 0.0
  %231 = vmatpush1.msra.mxu0 0.0
  %232 = vmatprep.subr.mxu0 0.0
  %233 = vmatpush1.msra.mxu0 0.0
  %234 = vmatprep.subr.mxu0 0.0
  %235 = vmatpush1.msra.mxu0 0.0
  %236 = vmatprep.subr.mxu0 0.0
  %237 = vmatpush1.msra.mxu0 0.0
  %238 = vmatprep.subr.mxu0 0.0
  %239 = vmatpush1.msra.mxu0 0.0
  %240 = vmatprep.subr.mxu0 0.0
  %241 = vmatpush1.msra.mxu0 0.0
  %242 = vmatprep.subr.mxu0 0.0
  %243 = vmatpush1.msra.mxu0 0.0
  %244 = vmatprep.subr.mxu0 0.0
  %245 = vmatpush1.msra.mxu0 0.0
  %246 = vmatprep.subr.mxu0 0.0
  %247 = vmatpush1.msra.mxu0 0.0
  %248 = vmatprep.subr.mxu0 0.0
  %249 = vmatpush1.msra.mxu0 0.0
  %250 = vmatprep.subr.mxu0 0.0
  %251 = vmatpush1.msra.mxu0 0.0
  %252 = vmatprep.subr.mxu0 0.0
  %253 = vmatpush1.msra.mxu0 0.0
  %254 = vmatprep.subr.mxu0 0.0
  %255 = vmatpush1.msra.mxu0 0.0
  %256 = vmatprep.subr.mxu0 0.0
  %257 = vmatpush1.msra.mxu0 0.0
  %258 = vmatprep.subr.mxu0 0.0
  %259 = vmatpush1.msra.mxu0 0.0
  %260 = vmatprep.subr.mxu0 0.0
  %261 = vmatpush1.msra.mxu0 0.0
  %262 = vmatprep.mubr.f32.mxu0 0.0
  %263 = vmatmul.mubr.f32.gmra.mrb[0].mxu0 %v39
  %v264 = vpop.f32.mrb[0].mxu0
  %v265 = vadd.f32 0.0, %v264
  %v266 = vpop.f32.mrb[0].mxu0
  %267 = vdwg.mxu0
  %s268 = scalar_lea.vmem %s1, 64
  %v269 = vld [vmem:[%s268] sm:$0xff]
  %v270 = vld [vmem:[%s268 + $0x8] sm:$0xff]
  %v271 = vld [vmem:[%s268 + $0x10] sm:$0xff]
  %v272 = vld [vmem:[%s268 + $0x18] sm:$0xff]
  %v273 = vld [vmem:[%s268 + $0x20] sm:$0xff]
  %v274 = vld [vmem:[%s268 + $0x28] sm:$0xff]
  %v275 = vld [vmem:[%s268 + $0x30] sm:$0xff]
  %v276 = vld [vmem:[%s268 + $0x38] sm:$0xff]
  %277 = vmatprep.subr.mxu0 0.0
  %278 = vmatpush1.msra.mxu0 %v269
  %279 = vmatprep.subr.mxu0 0.0
  %280 = vmatpush1.msra.mxu0 %v270
  %281 = vmatprep.subr.mxu0 0.0
  %282 = vmatpush1.msra.mxu0 %v271
  %283 = vmatprep.subr.mxu0 0.0
  %284 = vmatpush1.msra.mxu0 %v272
  %285 = vmatprep.subr.mxu0 0.0
  %286 = vmatpush1.msra.mxu0 %v273
  %287 = vmatprep.subr.mxu0 0.0
  %288 = vmatpush1.msra.mxu0 %v274
  %289 = vmatprep.subr.mxu0 0.0
  %290 = vmatpush1.msra.mxu0 %v275
  %291 = vmatprep.subr.mxu0 0.0
  %292 = vmatpush1.msra.mxu0 %v276
  %293 = vmatprep.subr.mxu0 0.0
  %294 = vmatpush1.msra.mxu0 0.0
  %295 = vmatprep.subr.mxu0 0.0
  %296 = vmatpush1.msra.mxu0 0.0
  %297 = vmatprep.subr.mxu0 0.0
  %298 = vmatpush1.msra.mxu0 0.0
  %299 = vmatprep.subr.mxu0 0.0
  %300 = vmatpush1.msra.mxu0 0.0
  %301 = vmatprep.subr.mxu0 0.0
  %302 = vmatpush1.msra.mxu0 0.0
  %303 = vmatprep.subr.mxu0 0.0
  %304 = vmatpush1.msra.mxu0 0.0
  %305 = vmatprep.subr.mxu0 0.0
  %306 = vmatpush1.msra.mxu0 0.0
  %307 = vmatprep.subr.mxu0 0.0
  %308 = vmatpush1.msra.mxu0 0.0
  %309 = vmatprep.subr.mxu0 0.0
  %310 = vmatpush1.msra.mxu0 0.0
  %311 = vmatprep.subr.mxu0 0.0
  %312 = vmatpush1.msra.mxu0 0.0
  %313 = vmatprep.subr.mxu0 0.0
  %314 = vmatpush1.msra.mxu0 0.0
  %315 = vmatprep.subr.mxu0 0.0
  %316 = vmatpush1.msra.mxu0 0.0
  %317 = vmatprep.subr.mxu0 0.0
  %318 = vmatpush1.msra.mxu0 0.0
  %319 = vmatprep.subr.mxu0 0.0
  %320 = vmatpush1.msra.mxu0 0.0
  %321 = vmatprep.subr.mxu0 0.0
  %322 = vmatpush1.msra.mxu0 0.0
  %323 = vmatprep.subr.mxu0 0.0
  %324 = vmatpush1.msra.mxu0 0.0
  %325 = vmatprep.subr.mxu0 0.0
  %326 = vmatpush1.msra.mxu0 0.0
  %327 = vmatprep.subr.mxu0 0.0
  %328 = vmatpush1.msra.mxu0 0.0
  %329 = vmatprep.subr.mxu0 0.0
  %330 = vmatpush1.msra.mxu0 0.0
  %331 = vmatprep.subr.mxu0 0.0
  %332 = vmatpush1.msra.mxu0 0.0
  %333 = vmatprep.subr.mxu0 0.0
  %334 = vmatpush1.msra.mxu0 0.0
  %335 = vmatprep.subr.mxu0 0.0
  %336 = vmatpush1.msra.mxu0 0.0
  %337 = vmatprep.subr.mxu0 0.0
  %338 = vmatpush1.msra.mxu0 0.0
  %339 = vmatprep.subr.mxu0 0.0
  %340 = vmatpush1.msra.mxu0 0.0
  %341 = vmatprep.mubr.f32.mxu0 0.0
  %342 = vmatmul.mubr.f32.gmra.mrb[0].mxu0 %v39
  %v343 = vpop.f32.mrb[0].mxu0
  %v344 = vadd.f32 0.0, %v343
  %v345 = vpop.f32.mrb[0].mxu0
  %346 = vdwg.mxu0
  %vm347 = vcmask 125952
  %v348 = vsel %vm347, %v108, 0.0
  %349 = vadd.xlane.f32.xlu0 %v348
  %v350 = vpop.xlane.xlu0 %349
  %v351 = vsel %vm347, %v187, 0.0
  %352 = vadd.xlane.f32.xlu0 %v351
  %v353 = vpop.xlane.xlu0 %352
  %v354 = vsel %vm347, %v265, 0.0
  %355 = vadd.xlane.f32.xlu0 %v354
  %v356 = vpop.xlane.xlu0 %355
  %v357 = vsel %vm347, %v344, 0.0
  %358 = vadd.xlane.f32.xlu0 %v357
  %v359 = vpop.xlane.xlu0 %358
  %v360 = vadd.f32 %v350, 0.0
  %v361 = vadd.f32 %v360, %v353
  %v362 = vadd.f32 %v361, %v356
  %v363 = vadd.f32 %v362, %v359
  %v364 = vrcp.pop 64.0
  %v365 = vmul.f32 %v363, %v364
  %v366 = vsub.f32 %v108, %v365
  %v367 = vmul.f32 %v366, %v366
  %v368 = vsel %vm347, %v367, 0.0
  %369 = vadd.xlane.f32.xlu0 %v368
  %v370 = vpop.xlane.xlu0 %369
  %v371 = vsub.f32 %v187, %v365
  %v372 = vmul.f32 %v371, %v371
  %v373 = vsel %vm347, %v372, 0.0
  %374 = vadd.xlane.f32.xlu0 %v373
  %v375 = vpop.xlane.xlu0 %374
  %v376 = vsub.f32 %v265, %v365
  %v377 = vmul.f32 %v376, %v376
  %v378 = vsel %vm347, %v377, 0.0
  %379 = vadd.xlane.f32.xlu0 %v378
  %v380 = vpop.xlane.xlu0 %379
  %v381 = vsub.f32 %v344, %v365
  %v382 = vmul.f32 %v381, %v381
  %v383 = vsel %vm347, %v382, 0.0
  %384 = vadd.xlane.f32.xlu0 %v383
  %v385 = vpop.xlane.xlu0 %384
  %v386 = vadd.f32 %v370, 0.0
  %v387 = vadd.f32 %v386, %v375
  %v388 = vadd.f32 %v387, %v380
  %v389 = vadd.f32 %v388, %v385
  %v390 = vmul.f32 %v389, %v364
  %v391 = vld [vmem:[%s3] sm:$0xf]
  %v392 = vadd.f32 %v390, 1e-05
  %v393 = vrsqrt.pop %v392
  %v394 = vmul.f32 %v391, %v393
  %v395 = vld [vmem:[%s4] sm:$0xf]
  %v396 = vmul.f32 %v365, %v394
  %v397 = vsub.f32 %v395, %v396
  %v398 = vld [vmem:[%s5] sm:$0xff]
  %v399 = vld [vmem:[%s5 + $0x8] sm:$0xff]
  %v400 = vld [vmem:[%s5 + $0x10] sm:$0xff]
  %v401 = vld [vmem:[%s5 + $0x18] sm:$0xff]
  %v402 = vld [vmem:[%s5 + $0x20] sm:$0xff]
  %v403 = vld [vmem:[%s5 + $0x28] sm:$0xff]
  %v404 = vld [vmem:[%s5 + $0x30] sm:$0xff]
  %v405 = vld [vmem:[%s5 + $0x38] sm:$0xff]
  %v406 = vld [vmem:[%s6] sm:$0xff]
  %v407 = vld [vmem:[%s6 + $0x8] sm:$0xff]
  %v408 = vld [vmem:[%s6 + $0x10] sm:$0xff]
  %v409 = vld [vmem:[%s6 + $0x18] sm:$0xff]
  %v410 = vld [vmem:[%s6 + $0x20] sm:$0xff]
  %v411 = vld [vmem:[%s6 + $0x28] sm:$0xff]
  %v412 = vld [vmem:[%s6 + $0x30] sm:$0xff]
  %v413 = vld [vmem:[%s6 + $0x38] sm:$0xff]
  %415 = vset.pattern.permute.xlu0 0
  %416 = vperm.xlu0 %415, %v394
  %v417 = vpop.permute.xlu0 %416
  %v419 = vmul.f32 %v108, %v417
  %421 = vset.pattern.permute.xlu0 0
  %422 = vperm.xlu0 %421, %v397
  %v423 = vpop.permute.xlu0 %422
  %v425 = vadd.f32 %v419, %v423
  %v426 = vmax.f32 %v425, 0.0
  %v427 = vmul.f32 %v265, %v417
  %v428 = vadd.f32 %v427, %v423
  %v429 = vmax.f32 %v428, 0.0
  %431 = vset.pattern.permute.xlu0 0
  %432 = vperm.xlu0 %431, %v398
  %v433 = vpop.permute.xlu0 %432
  %436 = vset.pattern.permute.xlu0 0
  %437 = vperm.xlu0 %436, %v399
  %v438 = vpop.permute.xlu0 %437
  %441 = vset.pattern.permute.xlu0 0
  %442 = vperm.xlu0 %441, %v400
  %v443 = vpop.permute.xlu0 %442
  %446 = vset.pattern.permute.xlu0 0
  %447 = vperm.xlu0 %446, %v401
  %v448 = vpop.permute.xlu0 %447
  %451 = vset.pattern.permute.xlu0 0
  %452 = vperm.xlu0 %451, %v402
  %v453 = vpop.permute.xlu0 %452
  %456 = vset.pattern.permute.xlu0 0
  %457 = vperm.xlu0 %456, %v403
  %v458 = vpop.permute.xlu0 %457
  %461 = vset.pattern.permute.xlu0 0
  %462 = vperm.xlu0 %461, %v404
  %v463 = vpop.permute.xlu0 %462
  %466 = vset.pattern.permute.xlu0 0
  %467 = vperm.xlu0 %466, %v405
  %v468 = vpop.permute.xlu0 %467
  %v470 = vlaneseq
  %v471 = vshrl.u32 %v470, 7
  %v472 = vsub.s32 0, %v471
  %v473 = vrot.slane %v426, %v472
  %v474 = vmul.f32 %v433, %v473
  %v475 = vmul.f32 %v438, %v473
  %v476 = vmul.f32 %v443, %v473
  %v477 = vmul.f32 %v448, %v473
  %v478 = vmul.f32 %v453, %v473
  %v479 = vmul.f32 %v458, %v473
  %v480 = vmul.f32 %v463, %v473
  %v481 = vmul.f32 %v468, %v473
  %482 = vset.pattern.permute.xlu0 1
  %483 = vperm.xlu0 %482, %v398
  %v484 = vpop.permute.xlu0 %483
  %486 = vset.pattern.permute.xlu0 1
  %487 = vperm.xlu0 %486, %v399
  %v488 = vpop.permute.xlu0 %487
  %490 = vset.pattern.permute.xlu0 1
  %491 = vperm.xlu0 %490, %v400
  %v492 = vpop.permute.xlu0 %491
  %494 = vset.pattern.permute.xlu0 1
  %495 = vperm.xlu0 %494, %v401
  %v496 = vpop.permute.xlu0 %495
  %498 = vset.pattern.permute.xlu0 1
  %499 = vperm.xlu0 %498, %v402
  %v500 = vpop.permute.xlu0 %499
  %502 = vset.pattern.permute.xlu0 1
  %503 = vperm.xlu0 %502, %v403
  %v504 = vpop.permute.xlu0 %503
  %506 = vset.pattern.permute.xlu0 1
  %507 = vperm.xlu0 %506, %v404
  %v508 = vpop.permute.xlu0 %507
  %510 = vset.pattern.permute.xlu0 1
  %511 = vperm.xlu0 %510, %v405
  %v512 = vpop.permute.xlu0 %511
  %v514 = vlaneseq
  %v515 = vshrl.u32 %v514, 7
  %v516 = vsub.s32 1, %v515
  %v517 = vrot.slane %v426, %v516
  %v518 = vmul.f32 %v484, %v517
  %v519 = vmul.f32 %v488, %v517
  %v520 = vmul.f32 %v492, %v517
  %v521 = vmul.f32 %v496, %v517
  %v522 = vmul.f32 %v500, %v517
  %v523 = vmul.f32 %v504, %v517
  %v524 = vmul.f32 %v508, %v517
  %v525 = vmul.f32 %v512, %v517
  %v526 = vadd.f32 %v474, %v518
  %v527 = vadd.f32 %v475, %v519
  %v528 = vadd.f32 %v476, %v520
  %v529 = vadd.f32 %v477, %v521
  %v530 = vadd.f32 %v478, %v522
  %v531 = vadd.f32 %v479, %v523
  %v532 = vadd.f32 %v480, %v524
  %v533 = vadd.f32 %v481, %v525
  %534 = vset.pattern.permute.xlu0 2
  %535 = vperm.xlu0 %534, %v398
  %v536 = vpop.permute.xlu0 %535
  %538 = vset.pattern.permute.xlu0 2
  %539 = vperm.xlu0 %538, %v399
  %v540 = vpop.permute.xlu0 %539
  %542 = vset.pattern.permute.xlu0 2
  %543 = vperm.xlu0 %542, %v400
  %v544 = vpop.permute.xlu0 %543
  %546 = vset.pattern.permute.xlu0 2
  %547 = vperm.xlu0 %546, %v401
  %v548 = vpop.permute.xlu0 %547
  %550 = vset.pattern.permute.xlu0 2
  %551 = vperm.xlu0 %550, %v402
  %v552 = vpop.permute.xlu0 %551
  %554 = vset.pattern.permute.xlu0 2
  %555 = vperm.xlu0 %554, %v403
  %v556 = vpop.permute.xlu0 %555
  %558 = vset.pattern.permute.xlu0 2
  %559 = vperm.xlu0 %558, %v404
  %v560 = vpop.permute.xlu0 %559
  %562 = vset.pattern.permute.xlu0 2
  %563 = vperm.xlu0 %562, %v405
  %v564 = vpop.permute.xlu0 %563
  %v566 = vlaneseq
  %v567 = vshrl.u32 %v566, 7
  %v568 = vsub.s32 2, %v567
  %v569 = vrot.slane %v426, %v568
  %v570 = vmul.f32 %v536, %v569
  %v571 = vmul.f32 %v540, %v569
  %v572 = vmul.f32 %v544, %v569
  %v573 = vmul.f32 %v548, %v569
  %v574 = vmul.f32 %v552, %v569
  %v575 = vmul.f32 %v556, %v569
  %v576 = vmul.f32 %v560, %v569
  %v577 = vmul.f32 %v564, %v569
  %v578 = vadd.f32 %v526, %v570
  %v579 = vadd.f32 %v527, %v571
  %v580 = vadd.f32 %v528, %v572
  %v581 = vadd.f32 %v529, %v573
  %v582 = vadd.f32 %v530, %v574
  %v583 = vadd.f32 %v531, %v575
  %v584 = vadd.f32 %v532, %v576
  %v585 = vadd.f32 %v533, %v577
  %586 = vset.pattern.permute.xlu0 3
  %587 = vperm.xlu0 %586, %v398
  %v588 = vpop.permute.xlu0 %587
  %590 = vset.pattern.permute.xlu0 3
  %591 = vperm.xlu0 %590, %v399
  %v592 = vpop.permute.xlu0 %591
  %594 = vset.pattern.permute.xlu0 3
  %595 = vperm.xlu0 %594, %v400
  %v596 = vpop.permute.xlu0 %595
  %598 = vset.pattern.permute.xlu0 3
  %599 = vperm.xlu0 %598, %v401
  %v600 = vpop.permute.xlu0 %599
  %602 = vset.pattern.permute.xlu0 3
  %603 = vperm.xlu0 %602, %v402
  %v604 = vpop.permute.xlu0 %603
  %606 = vset.pattern.permute.xlu0 3
  %607 = vperm.xlu0 %606, %v403
  %v608 = vpop.permute.xlu0 %607
  %610 = vset.pattern.permute.xlu0 3
  %611 = vperm.xlu0 %610, %v404
  %v612 = vpop.permute.xlu0 %611
  %614 = vset.pattern.permute.xlu0 3
  %615 = vperm.xlu0 %614, %v405
  %v616 = vpop.permute.xlu0 %615
  %v618 = vlaneseq
  %v619 = vshrl.u32 %v618, 7
  %v620 = vsub.s32 3, %v619
  %v621 = vrot.slane %v426, %v620
  %v622 = vmul.f32 %v588, %v621
  %v623 = vmul.f32 %v592, %v621
  %v624 = vmul.f32 %v596, %v621
  %v625 = vmul.f32 %v600, %v621
  %v626 = vmul.f32 %v604, %v621
  %v627 = vmul.f32 %v608, %v621
  %v628 = vmul.f32 %v612, %v621
  %v629 = vmul.f32 %v616, %v621
  %v630 = vadd.f32 %v578, %v622
  %v631 = vadd.f32 %v579, %v623
  %v632 = vadd.f32 %v580, %v624
  %v633 = vadd.f32 %v581, %v625
  %v634 = vadd.f32 %v582, %v626
  %v635 = vadd.f32 %v583, %v627
  %v636 = vadd.f32 %v584, %v628
  %v637 = vadd.f32 %v585, %v629
  %vm638 = vcmask 130048
  %639 = vst.msk [vmem:[%s7] sm:$0xff] %vm638, %v630
  %640 = vst.msk [vmem:[%s7 + $0x8] sm:$0xff] %vm638, %v631
  %641 = vst.msk [vmem:[%s7 + $0x10] sm:$0xff] %vm638, %v632
  %642 = vst.msk [vmem:[%s7 + $0x18] sm:$0xff] %vm638, %v633
  %643 = vst.msk [vmem:[%s7 + $0x20] sm:$0xff] %vm638, %v634
  %644 = vst.msk [vmem:[%s7 + $0x28] sm:$0xff] %vm638, %v635
  %645 = vst.msk [vmem:[%s7 + $0x30] sm:$0xff] %vm638, %v636
  %646 = vst.msk [vmem:[%s7 + $0x38] sm:$0xff] %vm638, %v637
  %648 = vset.pattern.permute.xlu0 0
  %649 = vperm.xlu0 %648, %v406
  %v650 = vpop.permute.xlu0 %649
  %653 = vset.pattern.permute.xlu0 0
  %654 = vperm.xlu0 %653, %v407
  %v655 = vpop.permute.xlu0 %654
  %658 = vset.pattern.permute.xlu0 0
  %659 = vperm.xlu0 %658, %v408
  %v660 = vpop.permute.xlu0 %659
  %663 = vset.pattern.permute.xlu0 0
  %664 = vperm.xlu0 %663, %v409
  %v665 = vpop.permute.xlu0 %664
  %668 = vset.pattern.permute.xlu0 0
  %669 = vperm.xlu0 %668, %v410
  %v670 = vpop.permute.xlu0 %669
  %673 = vset.pattern.permute.xlu0 0
  %674 = vperm.xlu0 %673, %v411
  %v675 = vpop.permute.xlu0 %674
  %678 = vset.pattern.permute.xlu0 0
  %679 = vperm.xlu0 %678, %v412
  %v680 = vpop.permute.xlu0 %679
  %683 = vset.pattern.permute.xlu0 0
  %684 = vperm.xlu0 %683, %v413
  %v685 = vpop.permute.xlu0 %684
  %v687 = vlaneseq
  %v688 = vshrl.u32 %v687, 7
  %v689 = vsub.s32 0, %v688
  %v690 = vrot.slane %v429, %v689
  %v691 = vmul.f32 %v650, %v690
  %v692 = vmul.f32 %v655, %v690
  %v693 = vmul.f32 %v660, %v690
  %v694 = vmul.f32 %v665, %v690
  %v695 = vmul.f32 %v670, %v690
  %v696 = vmul.f32 %v675, %v690
  %v697 = vmul.f32 %v680, %v690
  %v698 = vmul.f32 %v685, %v690
  %699 = vset.pattern.permute.xlu0 1
  %700 = vperm.xlu0 %699, %v406
  %v701 = vpop.permute.xlu0 %700
  %703 = vset.pattern.permute.xlu0 1
  %704 = vperm.xlu0 %703, %v407
  %v705 = vpop.permute.xlu0 %704
  %707 = vset.pattern.permute.xlu0 1
  %708 = vperm.xlu0 %707, %v408
  %v709 = vpop.permute.xlu0 %708
  %711 = vset.pattern.permute.xlu0 1
  %712 = vperm.xlu0 %711, %v409
  %v713 = vpop.permute.xlu0 %712
  %715 = vset.pattern.permute.xlu0 1
  %716 = vperm.xlu0 %715, %v410
  %v717 = vpop.permute.xlu0 %716
  %719 = vset.pattern.permute.xlu0 1
  %720 = vperm.xlu0 %719, %v411
  %v721 = vpop.permute.xlu0 %720
  %723 = vset.pattern.permute.xlu0 1
  %724 = vperm.xlu0 %723, %v412
  %v725 = vpop.permute.xlu0 %724
  %727 = vset.pattern.permute.xlu0 1
  %728 = vperm.xlu0 %727, %v413
  %v729 = vpop.permute.xlu0 %728
  %v731 = vlaneseq
  %v732 = vshrl.u32 %v731, 7
  %v733 = vsub.s32 1, %v732
  %v734 = vrot.slane %v429, %v733
  %v735 = vmul.f32 %v701, %v734
  %v736 = vmul.f32 %v705, %v734
  %v737 = vmul.f32 %v709, %v734
  %v738 = vmul.f32 %v713, %v734
  %v739 = vmul.f32 %v717, %v734
  %v740 = vmul.f32 %v721, %v734
  %v741 = vmul.f32 %v725, %v734
  %v742 = vmul.f32 %v729, %v734
  %v743 = vadd.f32 %v691, %v735
  %v744 = vadd.f32 %v692, %v736
  %v745 = vadd.f32 %v693, %v737
  %v746 = vadd.f32 %v694, %v738
  %v747 = vadd.f32 %v695, %v739
  %v748 = vadd.f32 %v696, %v740
  %v749 = vadd.f32 %v697, %v741
  %v750 = vadd.f32 %v698, %v742
  %751 = vset.pattern.permute.xlu0 2
  %752 = vperm.xlu0 %751, %v406
  %v753 = vpop.permute.xlu0 %752
  %755 = vset.pattern.permute.xlu0 2
  %756 = vperm.xlu0 %755, %v407
  %v757 = vpop.permute.xlu0 %756
  %759 = vset.pattern.permute.xlu0 2
  %760 = vperm.xlu0 %759, %v408
  %v761 = vpop.permute.xlu0 %760
  %763 = vset.pattern.permute.xlu0 2
  %764 = vperm.xlu0 %763, %v409
  %v765 = vpop.permute.xlu0 %764
  %767 = vset.pattern.permute.xlu0 2
  %768 = vperm.xlu0 %767, %v410
  %v769 = vpop.permute.xlu0 %768
  %771 = vset.pattern.permute.xlu0 2
  %772 = vperm.xlu0 %771, %v411
  %v773 = vpop.permute.xlu0 %772
  %775 = vset.pattern.permute.xlu0 2
  %776 = vperm.xlu0 %775, %v412
  %v777 = vpop.permute.xlu0 %776
  %779 = vset.pattern.permute.xlu0 2
  %780 = vperm.xlu0 %779, %v413
  %v781 = vpop.permute.xlu0 %780
  %v783 = vlaneseq
  %v784 = vshrl.u32 %v783, 7
  %v785 = vsub.s32 2, %v784
  %v786 = vrot.slane %v429, %v785
  %v787 = vmul.f32 %v753, %v786
  %v788 = vmul.f32 %v757, %v786
  %v789 = vmul.f32 %v761, %v786
  %v790 = vmul.f32 %v765, %v786
  %v791 = vmul.f32 %v769, %v786
  %v792 = vmul.f32 %v773, %v786
  %v793 = vmul.f32 %v777, %v786
  %v794 = vmul.f32 %v781, %v786
  %v795 = vadd.f32 %v743, %v787
  %v796 = vadd.f32 %v744, %v788
  %v797 = vadd.f32 %v745, %v789
  %v798 = vadd.f32 %v746, %v790
  %v799 = vadd.f32 %v747, %v791
  %v800 = vadd.f32 %v748, %v792
  %v801 = vadd.f32 %v749, %v793
  %v802 = vadd.f32 %v750, %v794
  %803 = vset.pattern.permute.xlu0 3
  %804 = vperm.xlu0 %803, %v406
  %v805 = vpop.permute.xlu0 %804
  %807 = vset.pattern.permute.xlu0 3
  %808 = vperm.xlu0 %807, %v407
  %v809 = vpop.permute.xlu0 %808
  %811 = vset.pattern.permute.xlu0 3
  %812 = vperm.xlu0 %811, %v408
  %v813 = vpop.permute.xlu0 %812
  %815 = vset.pattern.permute.xlu0 3
  %816 = vperm.xlu0 %815, %v409
  %v817 = vpop.permute.xlu0 %816
  %819 = vset.pattern.permute.xlu0 3
  %820 = vperm.xlu0 %819, %v410
  %v821 = vpop.permute.xlu0 %820
  %823 = vset.pattern.permute.xlu0 3
  %824 = vperm.xlu0 %823, %v411
  %v825 = vpop.permute.xlu0 %824
  %827 = vset.pattern.permute.xlu0 3
  %828 = vperm.xlu0 %827, %v412
  %v829 = vpop.permute.xlu0 %828
  %831 = vset.pattern.permute.xlu0 3
  %832 = vperm.xlu0 %831, %v413
  %v833 = vpop.permute.xlu0 %832
  %v835 = vlaneseq
  %v836 = vshrl.u32 %v835, 7
  %v837 = vsub.s32 3, %v836
  %v838 = vrot.slane %v429, %v837
  %v839 = vmul.f32 %v805, %v838
  %v840 = vmul.f32 %v809, %v838
  %v841 = vmul.f32 %v813, %v838
  %v842 = vmul.f32 %v817, %v838
  %v843 = vmul.f32 %v821, %v838
  %v844 = vmul.f32 %v825, %v838
  %v845 = vmul.f32 %v829, %v838
  %v846 = vmul.f32 %v833, %v838
  %v847 = vadd.f32 %v795, %v839
  %v848 = vadd.f32 %v796, %v840
  %v849 = vadd.f32 %v797, %v841
  %v850 = vadd.f32 %v798, %v842
  %v851 = vadd.f32 %v799, %v843
  %v852 = vadd.f32 %v800, %v844
  %v853 = vadd.f32 %v801, %v845
  %v854 = vadd.f32 %v802, %v846
  %855 = vst.msk [vmem:[%s8] sm:$0xff] %vm638, %v847
  %856 = vst.msk [vmem:[%s8 + $0x8] sm:$0xff] %vm638, %v848
  %857 = vst.msk [vmem:[%s8 + $0x10] sm:$0xff] %vm638, %v849
  %858 = vst.msk [vmem:[%s8 + $0x18] sm:$0xff] %vm638, %v850
  %859 = vst.msk [vmem:[%s8 + $0x20] sm:$0xff] %vm638, %v851
  %860 = vst.msk [vmem:[%s8 + $0x28] sm:$0xff] %vm638, %v852
  %861 = vst.msk [vmem:[%s8 + $0x30] sm:$0xff] %vm638, %v853
  %862 = vst.msk [vmem:[%s8 + $0x38] sm:$0xff] %vm638, %v854
  %v863 = vmul.f32 %v187, %v417
  %v864 = vadd.f32 %v863, %v423
  %v865 = vmax.f32 %v864, 0.0
  %v866 = vmul.f32 %v344, %v417
  %v867 = vadd.f32 %v866, %v423
  %v868 = vmax.f32 %v867, 0.0
  %v869 = vlaneseq
  %v870 = vshrl.u32 %v869, 7
  %v871 = vsub.s32 0, %v870
  %v872 = vrot.slane %v865, %v871
  %v873 = vmul.f32 %v433, %v872
  %v874 = vmul.f32 %v438, %v872
  %v875 = vmul.f32 %v443, %v872
  %v876 = vmul.f32 %v448, %v872
  %v877 = vmul.f32 %v453, %v872
  %v878 = vmul.f32 %v458, %v872
  %v879 = vmul.f32 %v463, %v872
  %v880 = vmul.f32 %v468, %v872
  %v881 = vlaneseq
  %v882 = vshrl.u32 %v881, 7
  %v883 = vsub.s32 1, %v882
  %v884 = vrot.slane %v865, %v883
  %v885 = vmul.f32 %v484, %v884
  %v886 = vmul.f32 %v488, %v884
  %v887 = vmul.f32 %v492, %v884
  %v888 = vmul.f32 %v496, %v884
  %v889 = vmul.f32 %v500, %v884
  %v890 = vmul.f32 %v504, %v884
  %v891 = vmul.f32 %v508, %v884
  %v892 = vmul.f32 %v512, %v884
  %v893 = vadd.f32 %v873, %v885
  %v894 = vadd.f32 %v874, %v886
  %v895 = vadd.f32 %v875, %v887
  %v896 = vadd.f32 %v876, %v888
  %v897 = vadd.f32 %v877, %v889
  %v898 = vadd.f32 %v878, %v890
  %v899 = vadd.f32 %v879, %v891
  %v900 = vadd.f32 %v880, %v892
  %v901 = vlaneseq
  %v902 = vshrl.u32 %v901, 7
  %v903 = vsub.s32 2, %v902
  %v904 = vrot.slane %v865, %v903
  %v905 = vmul.f32 %v536, %v904
  %v906 = vmul.f32 %v540, %v904
  %v907 = vmul.f32 %v544, %v904
  %v908 = vmul.f32 %v548, %v904
  %v909 = vmul.f32 %v552, %v904
  %v910 = vmul.f32 %v556, %v904
  %v911 = vmul.f32 %v560, %v904
  %v912 = vmul.f32 %v564, %v904
  %v913 = vadd.f32 %v893, %v905
  %v914 = vadd.f32 %v894, %v906
  %v915 = vadd.f32 %v895, %v907
  %v916 = vadd.f32 %v896, %v908
  %v917 = vadd.f32 %v897, %v909
  %v918 = vadd.f32 %v898, %v910
  %v919 = vadd.f32 %v899, %v911
  %v920 = vadd.f32 %v900, %v912
  %v921 = vlaneseq
  %v922 = vshrl.u32 %v921, 7
  %v923 = vsub.s32 3, %v922
  %v924 = vrot.slane %v865, %v923
  %v925 = vmul.f32 %v588, %v924
  %v926 = vmul.f32 %v592, %v924
  %v927 = vmul.f32 %v596, %v924
  %v928 = vmul.f32 %v600, %v924
  %v929 = vmul.f32 %v604, %v924
  %v930 = vmul.f32 %v608, %v924
  %v931 = vmul.f32 %v612, %v924
  %v932 = vmul.f32 %v616, %v924
  %v933 = vadd.f32 %v913, %v925
  %v934 = vadd.f32 %v914, %v926
  %v935 = vadd.f32 %v915, %v927
  %v936 = vadd.f32 %v916, %v928
  %v937 = vadd.f32 %v917, %v929
  %v938 = vadd.f32 %v918, %v930
  %v939 = vadd.f32 %v919, %v931
  %v940 = vadd.f32 %v920, %v932
  %s941 = scalar_lea.vmem %s7, 64
  %942 = vst.msk [vmem:[%s941] sm:$0xff] %vm638, %v933
  %943 = vst.msk [vmem:[%s941 + $0x8] sm:$0xff] %vm638, %v934
  %944 = vst.msk [vmem:[%s941 + $0x10] sm:$0xff] %vm638, %v935
  %945 = vst.msk [vmem:[%s941 + $0x18] sm:$0xff] %vm638, %v936
  %946 = vst.msk [vmem:[%s941 + $0x20] sm:$0xff] %vm638, %v937
  %947 = vst.msk [vmem:[%s941 + $0x28] sm:$0xff] %vm638, %v938
  %948 = vst.msk [vmem:[%s941 + $0x30] sm:$0xff] %vm638, %v939
  %949 = vst.msk [vmem:[%s941 + $0x38] sm:$0xff] %vm638, %v940
  %v950 = vlaneseq
  %v951 = vshrl.u32 %v950, 7
  %v952 = vsub.s32 0, %v951
  %v953 = vrot.slane %v868, %v952
  %v954 = vmul.f32 %v650, %v953
  %v955 = vmul.f32 %v655, %v953
  %v956 = vmul.f32 %v660, %v953
  %v957 = vmul.f32 %v665, %v953
  %v958 = vmul.f32 %v670, %v953
  %v959 = vmul.f32 %v675, %v953
  %v960 = vmul.f32 %v680, %v953
  %v961 = vmul.f32 %v685, %v953
  %v962 = vlaneseq
  %v963 = vshrl.u32 %v962, 7
  %v964 = vsub.s32 1, %v963
  %v965 = vrot.slane %v868, %v964
  %v966 = vmul.f32 %v701, %v965
  %v967 = vmul.f32 %v705, %v965
  %v968 = vmul.f32 %v709, %v965
  %v969 = vmul.f32 %v713, %v965
  %v970 = vmul.f32 %v717, %v965
  %v971 = vmul.f32 %v721, %v965
  %v972 = vmul.f32 %v725, %v965
  %v973 = vmul.f32 %v729, %v965
  %v974 = vadd.f32 %v954, %v966
  %v975 = vadd.f32 %v955, %v967
  %v976 = vadd.f32 %v956, %v968
  %v977 = vadd.f32 %v957, %v969
  %v978 = vadd.f32 %v958, %v970
  %v979 = vadd.f32 %v959, %v971
  %v980 = vadd.f32 %v960, %v972
  %v981 = vadd.f32 %v961, %v973
  %v982 = vlaneseq
  %v983 = vshrl.u32 %v982, 7
  %v984 = vsub.s32 2, %v983
  %v985 = vrot.slane %v868, %v984
  %v986 = vmul.f32 %v753, %v985
  %v987 = vmul.f32 %v757, %v985
  %v988 = vmul.f32 %v761, %v985
  %v989 = vmul.f32 %v765, %v985
  %v990 = vmul.f32 %v769, %v985
  %v991 = vmul.f32 %v773, %v985
  %v992 = vmul.f32 %v777, %v985
  %v993 = vmul.f32 %v781, %v985
  %v994 = vadd.f32 %v974, %v986
  %v995 = vadd.f32 %v975, %v987
  %v996 = vadd.f32 %v976, %v988
  %v997 = vadd.f32 %v977, %v989
  %v998 = vadd.f32 %v978, %v990
  %v999 = vadd.f32 %v979, %v991
  %v1000 = vadd.f32 %v980, %v992
  %v1001 = vadd.f32 %v981, %v993
  %v1002 = vlaneseq
  %v1003 = vshrl.u32 %v1002, 7
  %v1004 = vsub.s32 3, %v1003
  %v1005 = vrot.slane %v868, %v1004
  %v1006 = vmul.f32 %v805, %v1005
  %v1007 = vmul.f32 %v809, %v1005
  %v1008 = vmul.f32 %v813, %v1005
  %v1009 = vmul.f32 %v817, %v1005
  %v1010 = vmul.f32 %v821, %v1005
  %v1011 = vmul.f32 %v825, %v1005
  %v1012 = vmul.f32 %v829, %v1005
  %v1013 = vmul.f32 %v833, %v1005
  %v1014 = vadd.f32 %v994, %v1006
  %v1015 = vadd.f32 %v995, %v1007
  %v1016 = vadd.f32 %v996, %v1008
  %v1017 = vadd.f32 %v997, %v1009
  %v1018 = vadd.f32 %v998, %v1010
  %v1019 = vadd.f32 %v999, %v1011
  %v1020 = vadd.f32 %v1000, %v1012
  %v1021 = vadd.f32 %v1001, %v1013
  %s1022 = scalar_lea.vmem %s8, 64
  %1023 = vst.msk [vmem:[%s1022] sm:$0xff] %vm638, %v1014
  %1024 = vst.msk [vmem:[%s1022 + $0x8] sm:$0xff] %vm638, %v1015
  %1025 = vst.msk [vmem:[%s1022 + $0x10] sm:$0xff] %vm638, %v1016
  %1026 = vst.msk [vmem:[%s1022 + $0x18] sm:$0xff] %vm638, %v1017
  %1027 = vst.msk [vmem:[%s1022 + $0x20] sm:$0xff] %vm638, %v1018
  %1028 = vst.msk [vmem:[%s1022 + $0x28] sm:$0xff] %vm638, %v1019
  %1029 = vst.msk [vmem:[%s1022 + $0x30] sm:$0xff] %vm638, %v1020
  %1030 = vst.msk [vmem:[%s1022 + $0x38] sm:$0xff] %vm638, %v1021
  // Predicated region
  $region30: #{coord_attention.4} parent=0 // pred_check
    _
  $region31: #{coord_attention.4} parent=0 // pred_check_branch
    %1032 = sbr.rel (0) target = $region33
  $region32: #{coord_attention.4} parent=0 // pred_region
    _
  $region33: #{coord_attention.4} parent=0 // pred_fallthru
    _
  // Predicated region
  $region34: #{coord_attention.4} parent=0 // pred_check
    _
  $region35: #{coord_attention.4} parent=0 // pred_check_branch
    %1034 = sbr.rel (0) target = $region37
  $region36: #{coord_attention.4} parent=0 // pred_region
    _
  $region37: #{coord_attention.4} parent=0 // pred_fallthru
    _
  // Predicated region
  $region38: #{coord_attention.4} parent=0 // pred_check
    _
  $region39: #{coord_attention.4} parent=0 // pred_check_branch
    %1036 = sbr.rel (0) target = $region41
  $region40: #{coord_attention.4} parent=0 // pred_region
    _
  $region41: #{coord_attention.4} parent=0 // pred_fallthru
    _
  // Predicated region
  $region42: #{coord_attention.4} parent=0 // pred_check
    _
  $region43: #{coord_attention.4} parent=0 // pred_check_branch
    %1038 = sbr.rel (0) target = $region45
  $region44: #{coord_attention.4} parent=0 // pred_region
    _
  $region45: #{coord_attention.4} parent=0 // pred_fallthru
    _

</llo_original>
